<compile_context>
chip_gen: v7x
topology: tpu7x:2x2x1
jax: 0.10.0
libtpu: 0.0.40
codegen_flags: <defaults>
</compile_context>

<pallas_src>
import jax
import jax.numpy as jnp
from jax.experimental import pallas as pl
from jax.experimental.pallas import tpu as pltpu

N_NODES = 52      # BatchNorm1d(52) in the reference implies num_nodes = 52
N_PAD = 64        # node axis padded to a multiple of 8 (sublane tiles)
IN_CH = 4
HIDDEN = 32
OUT_CH = 4
WINDOW = 5
TF = WINDOW * IN_CH          # 20 fused temporal-feature columns
OUT_PAD = 128                # lane-dense padded output width
BN_EPS = 1e-5

# ---- weight-slab row/col layout (one (120, 128) f32 slab) ----
ROW_WSTACK = 0               # rows 0:20,   cols 0:32   stacked weight[t]   (TF, H)
COL_WS = HIDDEN              # rows 0:20,   cols 32:37  folded score weight (TF, T)
ROW_TBIAS = TF               # row  20,     cols 0:32   temporal bias
ROW_LBIAS = TF + 1           # row  21,     cols 0:128  linear bias (zero padded)
ROW_CONV1 = 24               # rows 24:56,  cols 0:32   conv1 weight
ROW_CONV2 = 56               # rows 56:88,  cols 0:32   conv2 weight
ROW_LIN = 88                 # rows 88:120, cols 0:128  linear weight (zero padded)
W_SLAB_ROWS = 120

# ---- node-slab col layout (one (64, 256) f32 slab) ----
COL_X = 0                    # cols 0:20     fused temporal features x (N, T*F)
COL_S1 = 128                 # cols 128:160  BN1 per-node scale (broadcast to H lanes)
COL_T1 = 160                 # cols 160:192  conv1_bias*scale1 + BN1 shift
COL_S2 = 192                 # cols 192:224  BN2 per-node scale
COL_T2 = 224                 # cols 224:256  conv2_bias*scale2 + BN2 shift
N_SLAB_COLS = 256


def temporal_gnn_kernel(a_ref, nslab_ref, w_ref, out_ref):
    f32 = jnp.float32
    H, T, F = HIDDEN, WINDOW, IN_CH
    A = a_ref[...]                                                # (64, 64)
    x = nslab_ref[:, COL_X:COL_X + TF]                            # (64, 20)

    # ---- temporal attention scores, folded weight: one (64,20)@(20,5) matmul ----
    scores = jnp.dot(x, w_ref[0:TF, COL_WS:COL_WS + T],
                     preferred_element_type=f32)                  # (64, 5)
    m = jnp.max(scores, axis=-1, keepdims=True)
    e = jnp.exp(scores - m)
    aw = e * pl.reciprocal(jnp.sum(e, axis=-1, keepdims=True), approx=True)

    # ---- input-side scaling + single stacked temporal projection ----
    scaled = jnp.concatenate(
        [aw[:, t:t + 1] * x[:, t * F:(t + 1) * F] for t in range(T)],
        axis=-1)                                                  # (64, 20)
    h = (jnp.dot(scaled, w_ref[0:TF, 0:H], preferred_element_type=f32)
         + w_ref[ROW_TBIAS:ROW_TBIAS + 1, 0:H])                   # (64, 32)

    # ---- conv1 -> folded bias+BN (per-node scale/shift) -> relu -> dropout(id) ----
    h1 = jnp.dot(A, jnp.dot(h, w_ref[ROW_CONV1:ROW_CONV1 + H, 0:H],
                            preferred_element_type=f32),
                 preferred_element_type=f32)
    h1 = h1 * nslab_ref[:, COL_S1:COL_S1 + H] + nslab_ref[:, COL_T1:COL_T1 + H]
    h1 = jnp.maximum(h1, 0.0)

    # ---- conv2 -> folded bias+BN -> relu -> dropout(id) ----
    h2 = jnp.dot(A, jnp.dot(h1, w_ref[ROW_CONV2:ROW_CONV2 + H, 0:H],
                            preferred_element_type=f32),
                 preferred_element_type=f32)
    h2 = h2 * nslab_ref[:, COL_S2:COL_S2 + H] + nslab_ref[:, COL_T2:COL_T2 + H]
    h2 = jnp.maximum(h2, 0.0)

    # ---- final linear, lane-dense (64, 128) store ----
    out_ref[...] = (jnp.dot(h2, w_ref[ROW_LIN:ROW_LIN + H, :],
                            preferred_element_type=f32)
                    + w_ref[ROW_LBIAS:ROW_LBIAS + 1, :])


def pack_params(x_ntf, weight, attn_w, bias,
                conv1_w, conv1_b, conv2_w, conv2_b,
                lin_w, lin_b,
                bn1_g, bn1_b, bn1_rm, bn1_rv,
                bn2_g, bn2_b, bn2_rm, bn2_rv):
    """Plain-JAX glue: fold/pack all parameters into two lane-dense slabs."""
    T, F, H = weight.shape

    # Weight slab (120, 128).
    w_stack = weight.reshape(T * F, H)                         # vertical stack
    proj = jnp.einsum('tfh,ho->tf', weight, attn_w)            # W_t @ attn_w, (T, F)
    ws = jnp.zeros((T * F, T), jnp.float32)
    for t in range(T):
        ws = ws.at[t * F:(t + 1) * F, t].set(proj[t])
    w_slab = jnp.zeros((W_SLAB_ROWS, 128), jnp.float32)
    w_slab = w_slab.at[0:T * F, 0:H].set(w_stack)
    w_slab = w_slab.at[0:T * F, COL_WS:COL_WS + T].set(ws)
    w_slab = w_slab.at[ROW_TBIAS, 0:H].set(bias)
    w_slab = w_slab.at[ROW_LBIAS, 0:OUT_CH].set(lin_b)
    w_slab = w_slab.at[ROW_CONV1:ROW_CONV1 + H, 0:H].set(conv1_w)
    w_slab = w_slab.at[ROW_CONV2:ROW_CONV2 + H, 0:H].set(conv2_w)
    w_slab = w_slab.at[ROW_LIN:ROW_LIN + H, 0:OUT_CH].set(lin_w)

    # Per-node slab (64, 256): fused features + folded bias/BN scale & shift.
    s1 = bn1_g / jnp.sqrt(bn1_rv + BN_EPS)
    t1 = bn1_b - bn1_rm * s1
    s2 = bn2_g / jnp.sqrt(bn2_rv + BN_EPS)
    t2 = bn2_b - bn2_rm * s2
    n = x_ntf.shape[0]
    nslab = jnp.zeros((N_PAD, N_SLAB_COLS), jnp.float32)
    nslab = nslab.at[0:n, COL_X:COL_X + T * F].set(x_ntf)
    nslab = nslab.at[0:n, COL_S1:COL_S1 + H].set(jnp.broadcast_to(s1[:, None], (n, H)))
    nslab = nslab.at[0:n, COL_T1:COL_T1 + H].set(s1[:, None] * conv1_b[None, :] + t1[:, None])
    nslab = nslab.at[0:n, COL_S2:COL_S2 + H].set(jnp.broadcast_to(s2[:, None], (n, H)))
    nslab = nslab.at[0:n, COL_T2:COL_T2 + H].set(s2[:, None] * conv2_b[None, :] + t2[:, None])
    return nslab, w_slab


def forward(a_pad, nslab, w_slab):
    vmem = pl.BlockSpec(memory_space=pltpu.MemorySpace.VMEM)
    out_pad = pl.pallas_call(
        temporal_gnn_kernel,
        out_shape=jax.ShapeDtypeStruct((N_PAD, OUT_PAD), jnp.float32),
        in_specs=[vmem, vmem, vmem],
        out_specs=vmem,
    )(a_pad, nslab, w_slab)
    return out_pad[:N_NODES, :OUT_CH]


def reference_forward(a_hat, x_seq, weight, attn_w, bias,
                      conv1_w, conv1_b, conv2_w, conv2_b, lin_w, lin_b,
                      bn1_g, bn1_b, bn1_rm, bn1_rv, bn2_g, bn2_b, bn2_rm, bn2_rv):
    """Pure-JAX reference mirroring the PyTorch forward (eval mode)."""
    h = jnp.stack([x_seq[t] @ weight[t] for t in range(WINDOW)], axis=1)   # (N,T,H)
    scores = jnp.einsum('nth,ho->nto', h, attn_w)                           # (N,T,1)
    w = jax.nn.softmax(scores, axis=1)
    h = jnp.sum(h * w, axis=1) + bias                                       # (N,H)

    def gcn_bn(x, W, b, g, be, rm, rv):
        y = a_hat @ (x @ W) + b
        y = (y - rm[:, None]) / jnp.sqrt(rv[:, None] + BN_EPS) * g[:, None] + be[:, None]
        return jnp.maximum(y, 0.0)

    h1 = gcn_bn(h, conv1_w, conv1_b, bn1_g, bn1_b, bn1_rm, bn1_rv)
    h2 = gcn_bn(h1, conv2_w, conv2_b, bn2_g, bn2_b, bn2_rm, bn2_rv)
    return h2 @ lin_w + lin_b


if __name__ == "__main__":
    key = jax.random.PRNGKey(0)
    ki = iter(jax.random.split(key, 24))

    def init(shape, scale=0.1):
        return (scale * jax.random.normal(next(ki), shape)).astype(jnp.float32)

    # Deterministic synthetic ring graph (symmetric), E = 2 * N_NODES edges.
    fwd_src = jnp.arange(N_NODES)
    fwd_dst = (jnp.arange(N_NODES) + 1) % N_NODES
    src = jnp.concatenate([fwd_src, fwd_dst])
    dst = jnp.concatenate([fwd_dst, fwd_src])
    edge_weight = jax.random.uniform(next(ki), (src.shape[0],), minval=0.5, maxval=1.5)

    # Plain-JAX glue: dense GCN-normalized adjacency (self loops + D^-1/2 A^T D^-1/2).
    A = jnp.zeros((N_NODES, N_NODES), jnp.float32).at[src, dst].add(edge_weight)
    A = A + jnp.eye(N_NODES, dtype=jnp.float32)
    deg = A.sum(axis=0)
    dinv = jnp.where(deg > 0, 1.0 / jnp.sqrt(deg), 0.0)
    a_hat = (dinv[:, None] * A.T * dinv[None, :]).astype(jnp.float32)
    a_pad = jnp.zeros((N_PAD, N_PAD), jnp.float32).at[:N_NODES, :N_NODES].set(a_hat)

    # Sequence of node features (T, N, F) -> node-major fused layout (N, T*F).
    x_seq = jax.random.normal(next(ki), (WINDOW, N_NODES, IN_CH), dtype=jnp.float32)
    x_ntf = jnp.transpose(x_seq, (1, 0, 2)).reshape(N_NODES, WINDOW * IN_CH)

    weight = init((WINDOW, IN_CH, HIDDEN))        # self.weight
    attn_w = init((HIDDEN, 1))                    # self.attention_weight
    bias = init((HIDDEN,))                        # self.bias
    conv1_w, conv1_b = init((HIDDEN, HIDDEN)), init((HIDDEN,))
    conv2_w, conv2_b = init((HIDDEN, HIDDEN)), init((HIDDEN,))
    lin_w, lin_b = init((HIDDEN, OUT_CH)), init((OUT_CH,))
    bn1_g = 1.0 + init((N_NODES,))
    bn1_b = init((N_NODES,))
    bn1_rm = init((N_NODES,))
    bn1_rv = jax.random.uniform(next(ki), (N_NODES,), minval=0.5, maxval=1.5)
    bn2_g = 1.0 + init((N_NODES,))
    bn2_b = init((N_NODES,))
    bn2_rm = init((N_NODES,))
    bn2_rv = jax.random.uniform(next(ki), (N_NODES,), minval=0.5, maxval=1.5)

    nslab, w_slab = pack_params(x_ntf, weight, attn_w, bias,
                                conv1_w, conv1_b, conv2_w, conv2_b,
                                lin_w, lin_b,
                                bn1_g, bn1_b, bn1_rm, bn1_rv,
                                bn2_g, bn2_b, bn2_rm, bn2_rv)

    out = forward(a_pad, nslab, w_slab)
    jax.block_until_ready(out)
    assert out.shape == (N_NODES, OUT_CH)

    ref = reference_forward(a_hat, x_seq, weight, attn_w, bias,
                            conv1_w, conv1_b, conv2_w, conv2_b, lin_w, lin_b,
                            bn1_g, bn1_b, bn1_rm, bn1_rv,
                            bn2_g, bn2_b, bn2_rm, bn2_rv)
    max_err = float(jnp.max(jnp.abs(out - ref)))
    assert max_err < 5e-2, f"kernel/reference mismatch: {max_err}"
    print("KERNEL_OK")
</pallas_src>

<mosaic_0001>
module attributes {stable_mosaic.version = 11 : i64} {
  func.func @temporal_gnn_kernel(%arg0: memref<64x64xf32, #tpu.memory_space<vmem>>, %arg1: memref<64x256xf32, #tpu.memory_space<vmem>>, %arg2: memref<120x128xf32, #tpu.memory_space<vmem>>, %arg3: memref<64x128xf32, #tpu.memory_space<vmem>>) attributes {dimension_semantics = [], scalar_prefetch = 0 : i64, scratch_operands = 0 : i64, tpu.core_type = #tpu.core_type<tc>} {
    %c0 = arith.constant 0 : index
    %c0_0 = arith.constant 0 : index
    %0 = vector.load %arg0[%c0, %c0_0] : memref<64x64xf32, #tpu.memory_space<vmem>>, vector<64x64xf32>
    %c0_1 = arith.constant 0 : index
    %c0_2 = arith.constant 0 : index
    %1 = vector.load %arg1[%c0_1, %c0_2] : memref<64x256xf32, #tpu.memory_space<vmem>>, vector<64x20xf32>
    %c0_3 = arith.constant 0 : index
    %c32 = arith.constant 32 : index
    %2 = vector.load %arg2[%c0_3, %c32] : memref<120x128xf32, #tpu.memory_space<vmem>>, vector<20x5xf32>
    %cst = arith.constant dense<0.000000e+00> : vector<64x5xf32>
    %3 = tpu.matmul %1, %2, %cst {dimension_numbers = #tpu.dot_dimension_numbers<[1], [0], [0], [1], [0, 0, 1, 1], [], []>} : vector<64x20xf32>, vector<20x5xf32>, vector<64x5xf32> -> vector<64x5xf32>
    %cst_4 = arith.constant dense<0xFF800000> : vector<64xf32>
    %4 = vector.multi_reduction <maximumf>, %3, %cst_4 [1] : vector<64x5xf32> to vector<64xf32>
    %5 = vector.shape_cast %4 : vector<64xf32> to vector<64x1xf32>
    %6 = vector.broadcast %5 : vector<64x1xf32> to vector<64x5xf32>
    %7 = arith.subf %3, %6 : vector<64x5xf32>
    %8 = math.exp %7 : vector<64x5xf32>
    %cst_5 = arith.constant dense<0.000000e+00> : vector<64xf32>
    %9 = vector.multi_reduction <add>, %8, %cst_5 [1] : vector<64x5xf32> to vector<64xf32>
    %10 = vector.shape_cast %9 : vector<64xf32> to vector<64x1xf32>
    %11 = tpu.reciprocal %10 {approx = true} : vector<64x1xf32> -> vector<64x1xf32>
    %12 = vector.broadcast %11 : vector<64x1xf32> to vector<64x5xf32>
    %13 = arith.mulf %8, %12 : vector<64x5xf32>
    %14 = vector.extract_strided_slice %13 {offsets = [0, 0], sizes = [64, 1], strides = [1, 1]} : vector<64x5xf32> to vector<64x1xf32>
    %15 = vector.extract_strided_slice %1 {offsets = [0, 0], sizes = [64, 4], strides = [1, 1]} : vector<64x20xf32> to vector<64x4xf32>
    %16 = vector.broadcast %14 : vector<64x1xf32> to vector<64x4xf32>
    %17 = arith.mulf %16, %15 : vector<64x4xf32>
    %18 = vector.extract_strided_slice %13 {offsets = [0, 1], sizes = [64, 1], strides = [1, 1]} : vector<64x5xf32> to vector<64x1xf32>
    %19 = vector.extract_strided_slice %1 {offsets = [0, 4], sizes = [64, 4], strides = [1, 1]} : vector<64x20xf32> to vector<64x4xf32>
    %20 = vector.broadcast %18 : vector<64x1xf32> to vector<64x4xf32>
    %21 = arith.mulf %20, %19 : vector<64x4xf32>
    %22 = vector.extract_strided_slice %13 {offsets = [0, 2], sizes = [64, 1], strides = [1, 1]} : vector<64x5xf32> to vector<64x1xf32>
    %23 = vector.extract_strided_slice %1 {offsets = [0, 8], sizes = [64, 4], strides = [1, 1]} : vector<64x20xf32> to vector<64x4xf32>
    %24 = vector.broadcast %22 : vector<64x1xf32> to vector<64x4xf32>
    %25 = arith.mulf %24, %23 : vector<64x4xf32>
    %26 = vector.extract_strided_slice %13 {offsets = [0, 3], sizes = [64, 1], strides = [1, 1]} : vector<64x5xf32> to vector<64x1xf32>
    %27 = vector.extract_strided_slice %1 {offsets = [0, 12], sizes = [64, 4], strides = [1, 1]} : vector<64x20xf32> to vector<64x4xf32>
    %28 = vector.broadcast %26 : vector<64x1xf32> to vector<64x4xf32>
    %29 = arith.mulf %28, %27 : vector<64x4xf32>
    %30 = vector.extract_strided_slice %13 {offsets = [0, 4], sizes = [64, 1], strides = [1, 1]} : vector<64x5xf32> to vector<64x1xf32>
    %31 = vector.extract_strided_slice %1 {offsets = [0, 16], sizes = [64, 4], strides = [1, 1]} : vector<64x20xf32> to vector<64x4xf32>
    %32 = vector.broadcast %30 : vector<64x1xf32> to vector<64x4xf32>
    %33 = arith.mulf %32, %31 : vector<64x4xf32>
    %34 = tpu.concatenate %17, %21, %25, %29, %33 in 1 : vector<64x4xf32>, vector<64x4xf32>, vector<64x4xf32>, vector<64x4xf32>, vector<64x4xf32> -> vector<64x20xf32>
    %c0_6 = arith.constant 0 : index
    %c0_7 = arith.constant 0 : index
    %35 = vector.load %arg2[%c0_6, %c0_7] : memref<120x128xf32, #tpu.memory_space<vmem>>, vector<20x32xf32>
    %cst_8 = arith.constant dense<0.000000e+00> : vector<64x32xf32>
    %36 = tpu.matmul %34, %35, %cst_8 {dimension_numbers = #tpu.dot_dimension_numbers<[1], [0], [0], [1], [0, 0, 1, 1], [], []>} : vector<64x20xf32>, vector<20x32xf32>, vector<64x32xf32> -> vector<64x32xf32>
    %c20 = arith.constant 20 : index
    %c0_9 = arith.constant 0 : index
    %37 = vector.load %arg2[%c20, %c0_9] : memref<120x128xf32, #tpu.memory_space<vmem>>, vector<1x32xf32>
    %38 = vector.broadcast %37 : vector<1x32xf32> to vector<64x32xf32>
    %39 = arith.addf %36, %38 : vector<64x32xf32>
    %c24 = arith.constant 24 : index
    %c0_10 = arith.constant 0 : index
    %40 = vector.load %arg2[%c24, %c0_10] : memref<120x128xf32, #tpu.memory_space<vmem>>, vector<32x32xf32>
    %cst_11 = arith.constant dense<0.000000e+00> : vector<64x32xf32>
    %41 = tpu.matmul %39, %40, %cst_11 {dimension_numbers = #tpu.dot_dimension_numbers<[1], [0], [0], [1], [0, 0, 1, 1], [], []>} : vector<64x32xf32>, vector<32x32xf32>, vector<64x32xf32> -> vector<64x32xf32>
    %cst_12 = arith.constant dense<0.000000e+00> : vector<64x32xf32>
    %42 = tpu.matmul %0, %41, %cst_12 {dimension_numbers = #tpu.dot_dimension_numbers<[1], [0], [0], [1], [0, 0, 1, 1], [], []>} : vector<64x64xf32>, vector<64x32xf32>, vector<64x32xf32> -> vector<64x32xf32>
    %c0_13 = arith.constant 0 : index
    %c128 = arith.constant 128 : index
    %43 = vector.load %arg1[%c0_13, %c128] : memref<64x256xf32, #tpu.memory_space<vmem>>, vector<64x32xf32>
    %44 = arith.mulf %42, %43 : vector<64x32xf32>
    %c0_14 = arith.constant 0 : index
    %c160 = arith.constant 160 : index
    %45 = vector.load %arg1[%c0_14, %c160] : memref<64x256xf32, #tpu.memory_space<vmem>>, vector<64x32xf32>
    %46 = arith.addf %44, %45 : vector<64x32xf32>
    %cst_15 = arith.constant 0.000000e+00 : f32
    %47 = vector.broadcast %cst_15 : f32 to vector<64x32xf32>
    %48 = arith.maximumf %46, %47 : vector<64x32xf32>
    %c56 = arith.constant 56 : index
    %c0_16 = arith.constant 0 : index
    %49 = vector.load %arg2[%c56, %c0_16] : memref<120x128xf32, #tpu.memory_space<vmem>>, vector<32x32xf32>
    %cst_17 = arith.constant dense<0.000000e+00> : vector<64x32xf32>
    %50 = tpu.matmul %48, %49, %cst_17 {dimension_numbers = #tpu.dot_dimension_numbers<[1], [0], [0], [1], [0, 0, 1, 1], [], []>} : vector<64x32xf32>, vector<32x32xf32>, vector<64x32xf32> -> vector<64x32xf32>
    %cst_18 = arith.constant dense<0.000000e+00> : vector<64x32xf32>
    %51 = tpu.matmul %0, %50, %cst_18 {dimension_numbers = #tpu.dot_dimension_numbers<[1], [0], [0], [1], [0, 0, 1, 1], [], []>} : vector<64x64xf32>, vector<64x32xf32>, vector<64x32xf32> -> vector<64x32xf32>
    %c0_19 = arith.constant 0 : index
    %c192 = arith.constant 192 : index
    %52 = vector.load %arg1[%c0_19, %c192] : memref<64x256xf32, #tpu.memory_space<vmem>>, vector<64x32xf32>
    %53 = arith.mulf %51, %52 : vector<64x32xf32>
    %c0_20 = arith.constant 0 : index
    %c224 = arith.constant 224 : index
    %54 = vector.load %arg1[%c0_20, %c224] : memref<64x256xf32, #tpu.memory_space<vmem>>, vector<64x32xf32>
    %55 = arith.addf %53, %54 : vector<64x32xf32>
    %cst_21 = arith.constant 0.000000e+00 : f32
    %56 = vector.broadcast %cst_21 : f32 to vector<64x32xf32>
    %57 = arith.maximumf %55, %56 : vector<64x32xf32>
    %c88 = arith.constant 88 : index
    %c0_22 = arith.constant 0 : index
    %58 = vector.load %arg2[%c88, %c0_22] : memref<120x128xf32, #tpu.memory_space<vmem>>, vector<32x128xf32>
    %cst_23 = arith.constant dense<0.000000e+00> : vector<64x128xf32>
    %59 = tpu.matmul %57, %58, %cst_23 {dimension_numbers = #tpu.dot_dimension_numbers<[1], [0], [0], [1], [0, 0, 1, 1], [], []>} : vector<64x32xf32>, vector<32x128xf32>, vector<64x128xf32> -> vector<64x128xf32>
    %c21 = arith.constant 21 : index
    %c0_24 = arith.constant 0 : index
    %60 = vector.load %arg2[%c21, %c0_24] : memref<120x128xf32, #tpu.memory_space<vmem>>, vector<1x128xf32>
    %61 = vector.broadcast %60 : vector<1x128xf32> to vector<64x128xf32>
    %62 = arith.addf %59, %61 : vector<64x128xf32>
    %c0_25 = arith.constant 0 : index
    %c0_26 = arith.constant 0 : index
    %63 = vector.load %arg3[%c0_25, %c0_26] : memref<64x128xf32, #tpu.memory_space<vmem>>, vector<64x128xf32>
    tpu.vector_store %arg3[%c0_25, %c0_26], %62 {strides = array<i32>} : memref<64x128xf32, #tpu.memory_space<vmem>>, vector<64x128xf32>,
    return
  }
}

</mosaic_0001>

<llo_original>
// kernel: tpu_custom_call.1
$region0: #{tpu_custom_call.1}
  #allocation0 [shape = 'u32[]', space=smem, size = 0x4, offset = 0x4, fixed_abs, tag = 'smem constant byte address 0x4 - core index']
  #allocation1 [shape = 'u32[144,128]{1,0:T(1,128)}', space=vmem, size = 0x12000, scoped, tag = 'internal scratch']
  %s0 = inlined_call_operand.hbm [shape: f32[64,64], index: 0, kind: input, shape index: {}]
  %s1 = inlined_call_operand.hbm [shape: f32[64,256], index: 1, kind: input, shape index: {}]
  %s2 = inlined_call_operand.hbm [shape: f32[120,128], index: 2, kind: input, shape index: {}]
  %s3 = inlined_call_operand.hbm [shape: f32[64,128], index: 3, kind: output, shape index: {}]
  %s4 = sld [smem:[#allocation0]]
  $region34: #{tpu_custom_call.1} parent=0
    _
  %s6 = ssub.s32 1, %s4
  %s7 = scalar_select 0, %s6, %s4
  $region1: #{tpu_custom_call.1} parent=0
    #allocation2 [shape = 'u8[32768]{0}', space=vmem, size = 0x8000, scoped, tag = 'input window, operand 0, single buffered']
    #allocation3 [shape = 's32[1]{0}', space=sflag, size = 0x4, scoped, tag = 'scoped memory for tpu_custom_call.1']
    #allocation4 [shape = 's32[1]{0}', space=sflag, size = 0x4, scoped, tag = 'scoped memory for tpu_custom_call.1']
    #allocation5 [shape = 'u8[65536]{0}', space=vmem, size = 0x10000, scoped, tag = 'input window, operand 1, single buffered']
    #allocation6 [shape = 's32[1]{0}', space=sflag, size = 0x4, scoped, tag = 'scoped memory for tpu_custom_call.1']
    #allocation7 [shape = 'u8[61440]{0}', space=vmem, size = 0xf000, scoped, tag = 'input window, operand 2, single buffered']
    #allocation8 [shape = 'u8[32768]{0}', space=vmem, size = 0x8000, scoped, tag = 'output window, operand 0, single buffered']
    %8 = vsyncpa [#allocation3], 0
    %9 = vsyncpa [#allocation6], 0
    %10 = vsyncpa [#allocation4], 0
    // Predicated region
    $region2: #{tpu_custom_call.1} parent=1 // pred_check
      _
    $region3: #{tpu_custom_call.1} parent=1 // pred_check_branch
      %12 = sbr.rel (0) target = $region5
    $region4: #{tpu_custom_call.1} parent=1 // pred_region
      %s14 = ssub.s32 1024, 1024
      %15 = vsyncadd [#allocation3], %s14
      %s16 = sshll.u32 [#allocation2], 4
      %s17 = int_to_ptr.vmem [resolvable:$true] %s16
      %22 = dma.hbm_to_vmem [thread:$0]  %s0, 1024, %s17, [#allocation3], 128, 128, 8
    $region5: #{tpu_custom_call.1} parent=1 // pred_fallthru
      _
    // Predicated region
    $region6: #{tpu_custom_call.1} parent=1 // pred_check
      _
    $region7: #{tpu_custom_call.1} parent=1 // pred_check_branch
      %24 = sbr.rel (0) target = $region9
    $region8: #{tpu_custom_call.1} parent=1 // pred_region
      %s26 = ssub.s32 2048, 2048
      %27 = vsyncadd [#allocation6], %s26
      %s28 = sshll.u32 [#allocation5], 4
      %s29 = int_to_ptr.vmem [resolvable:$true] %s28
      %34 = dma.hbm_to_vmem [thread:$0]  %s1, 2048, %s29, [#allocation6], 256, 256, 16
    $region9: #{tpu_custom_call.1} parent=1 // pred_fallthru
      _
    // Predicated region
    $region10: #{tpu_custom_call.1} parent=1 // pred_check
      _
    $region11: #{tpu_custom_call.1} parent=1 // pred_check_branch
      %36 = sbr.rel (0) target = $region13
    $region12: #{tpu_custom_call.1} parent=1 // pred_region
      %s38 = ssub.s32 1920, 1920
      %39 = vsyncadd [#allocation6], %s38
      %s40 = sshll.u32 [#allocation7], 4
      %s41 = int_to_ptr.vmem [resolvable:$true] %s40
      %46 = dma.hbm_to_vmem [thread:$0]  %s2, 1920, %s41, [#allocation6], 128, 128, 8
    $region13: #{tpu_custom_call.1} parent=1 // pred_fallthru
      _
    // Predicated region
    $region14: #{tpu_custom_call.1} parent=1 // pred_check
      _
    $region15: #{tpu_custom_call.1} parent=1 // pred_check_branch
      %48 = sbr.rel (0) target = $region17
    $region16: #{tpu_custom_call.1} parent=1 // pred_region
      %49 = dma.done [#allocation3], 1024
    $region17: #{tpu_custom_call.1} parent=1 // pred_fallthru
      _
    // Predicated region
    $region18: #{tpu_custom_call.1} parent=1 // pred_check
      _
    $region19: #{tpu_custom_call.1} parent=1 // pred_check_branch
      %51 = sbr.rel (0) target = $region21
    $region20: #{tpu_custom_call.1} parent=1 // pred_region
      %52 = dma.done [#allocation6], 2048
    $region21: #{tpu_custom_call.1} parent=1 // pred_fallthru
      _
    // Predicated region
    $region22: #{tpu_custom_call.1} parent=1 // pred_check
      _
    $region23: #{tpu_custom_call.1} parent=1 // pred_check_branch
      %54 = sbr.rel (0) target = $region25
    $region24: #{tpu_custom_call.1} parent=1 // pred_region
      %55 = dma.done [#allocation6], 1920
    $region25: #{tpu_custom_call.1} parent=1 // pred_fallthru
      _
    %v56 = vld [vmem:[#allocation2] sm:$0xff]
    %v57 = vld [vmem:[#allocation2 + $0x8] sm:$0xff]
    %v58 = vld [vmem:[#allocation2 + $0x10] sm:$0xff]
    %v59 = vld [vmem:[#allocation2 + $0x18] sm:$0xff]
    %v60 = vld [vmem:[#allocation2 + $0x20] sm:$0xff]
    %v61 = vld [vmem:[#allocation2 + $0x28] sm:$0xff]
    %v62 = vld [vmem:[#allocation2 + $0x30] sm:$0xff]
    %v63 = vld [vmem:[#allocation2 + $0x38] sm:$0xff]
    %v64 = vld [vmem:[#allocation5] sm:$0xff]
    %v65 = vld [vmem:[#allocation5 + $0x10] sm:$0xff]
    %v66 = vld [vmem:[#allocation5 + $0x20] sm:$0xff]
    %v67 = vld [vmem:[#allocation5 + $0x30] sm:$0xff]
    %v68 = vld [vmem:[#allocation5 + $0x40] sm:$0xff]
    %v69 = vld [vmem:[#allocation5 + $0x50] sm:$0xff]
    %v70 = vld [vmem:[#allocation5 + $0x60] sm:$0xff]
    %v71 = vld [vmem:[#allocation5 + $0x70] sm:$0xff]
    %v72 = vld [vmem:[#allocation7] sm:$0xff]
    %v73 = vld [vmem:[#allocation7 + $0x8] sm:$0xff]
    %v74 = vld [vmem:[#allocation7 + $0x10] sm:$0xf]
    %78 = vrot.lane.b32.xlu0 %v72, 96
    %v79 = vpop.permute.xlu0 %78
    %80 = vrot.lane.b32.xlu0 %v73, 96
    %v81 = vpop.permute.xlu0 %80
    %82 = vrot.lane.b32.xlu0 %v74, 96
    %v83 = vpop.permute.xlu0 %82
    %vm86 = vcmask 162816
    %v88 = vsel %vm86, %v64, 0
    %v91 = vsel %vm86, %v65, 0
    %v94 = vsel %vm86, %v66, 0
    %v97 = vsel %vm86, %v67, 0
    %v100 = vsel %vm86, %v68, 0
    %v103 = vsel %vm86, %v69, 0
    %v106 = vsel %vm86, %v70, 0
    %v109 = vsel %vm86, %v71, 0
    %vm111 = vcmask 1043456
    %v112 = vsel %vm111, %v83, 0
    %114 = vmatprep.subr.mxu0 0.0
    %115 = vmatpush1.msra.mxu0 %v79
    %116 = vmatprep.subr.mxu0 0.0
    %117 = vmatpush1.msra.mxu0 %v81
    %118 = vmatprep.subr.mxu0 0.0
    %119 = vmatpush1.msra.mxu0 %v112
    %120 = vmatprep.subr.mxu0 0.0
    %121 = vmatpush1.msra.mxu0 0.0
    %122 = vmatprep.subr.mxu0 0.0
    %123 = vmatpush1.msra.mxu0 0.0
    %124 = vmatprep.subr.mxu0 0.0
    %125 = vmatpush1.msra.mxu0 0.0
    %126 = vmatprep.subr.mxu0 0.0
    %127 = vmatpush1.msra.mxu0 0.0
    %128 = vmatprep.subr.mxu0 0.0
    %129 = vmatpush1.msra.mxu0 0.0
    %130 = vmatprep.subr.mxu0 0.0
    %131 = vmatpush1.msra.mxu0 0.0
    %132 = vmatprep.subr.mxu0 0.0
    %133 = vmatpush1.msra.mxu0 0.0
    %134 = vmatprep.subr.mxu0 0.0
    %135 = vmatpush1.msra.mxu0 0.0
    %136 = vmatprep.subr.mxu0 0.0
    %137 = vmatpush1.msra.mxu0 0.0
    %138 = vmatprep.subr.mxu0 0.0
    %139 = vmatpush1.msra.mxu0 0.0
    %140 = vmatprep.subr.mxu0 0.0
    %141 = vmatpush1.msra.mxu0 0.0
    %142 = vmatprep.subr.mxu0 0.0
    %143 = vmatpush1.msra.mxu0 0.0
    %144 = vmatprep.subr.mxu0 0.0
    %145 = vmatpush1.msra.mxu0 0.0
    %146 = vmatprep.subr.mxu0 0.0
    %147 = vmatpush1.msra.mxu0 0.0
    %148 = vmatprep.subr.mxu0 0.0
    %149 = vmatpush1.msra.mxu0 0.0
    %150 = vmatprep.subr.mxu0 0.0
    %151 = vmatpush1.msra.mxu0 0.0
    %152 = vmatprep.subr.mxu0 0.0
    %153 = vmatpush1.msra.mxu0 0.0
    %154 = vmatprep.subr.mxu0 0.0
    %155 = vmatpush1.msra.mxu0 0.0
    %156 = vmatprep.subr.mxu0 0.0
    %157 = vmatpush1.msra.mxu0 0.0
    %158 = vmatprep.subr.mxu0 0.0
    %159 = vmatpush1.msra.mxu0 0.0
    %160 = vmatprep.subr.mxu0 0.0
    %161 = vmatpush1.msra.mxu0 0.0
    %162 = vmatprep.subr.mxu0 0.0
    %163 = vmatpush1.msra.mxu0 0.0
    %164 = vmatprep.subr.mxu0 0.0
    %165 = vmatpush1.msra.mxu0 0.0
    %166 = vmatprep.subr.mxu0 0.0
    %167 = vmatpush1.msra.mxu0 0.0
    %168 = vmatprep.subr.mxu0 0.0
    %169 = vmatpush1.msra.mxu0 0.0
    %170 = vmatprep.subr.mxu0 0.0
    %171 = vmatpush1.msra.mxu0 0.0
    %172 = vmatprep.subr.mxu0 0.0
    %173 = vmatpush1.msra.mxu0 0.0
    %174 = vmatprep.subr.mxu0 0.0
    %175 = vmatpush1.msra.mxu0 0.0
    %176 = vmatprep.subr.mxu0 0.0
    %177 = vmatpush1.msra.mxu0 0.0
    %178 = vmatprep.mubr.f32.mxu0 0.0
    %179 = vmatmul.mubr.f32.gmra.mrb[0].mxu0 %v88
    %v180 = vpop.f32.mrb[0].mxu0
    %v181 = vadd.f32 0.0, %v180
    %v182 = vpop.f32.mrb[0].mxu0
    %183 = vmatprep.mubr.f32.mxu0 0.0
    %184 = vmatmul.mubr.f32.gmra.mrb[0].mxu0 %v91
    %v185 = vpop.f32.mrb[0].mxu0
    %v186 = vadd.f32 0.0, %v185
    %v187 = vpop.f32.mrb[0].mxu0
    %188 = vmatprep.mubr.f32.mxu0 0.0
    %189 = vmatmul.mubr.f32.gmra.mrb[0].mxu0 %v94
    %v190 = vpop.f32.mrb[0].mxu0
    %v191 = vadd.f32 0.0, %v190
    %v192 = vpop.f32.mrb[0].mxu0
    %193 = vmatprep.mubr.f32.mxu0 0.0
    %194 = vmatmul.mubr.f32.gmra.mrb[0].mxu0 %v97
    %v195 = vpop.f32.mrb[0].mxu0
    %v196 = vadd.f32 0.0, %v195
    %v197 = vpop.f32.mrb[0].mxu0
    %198 = vmatprep.mubr.f32.mxu0 0.0
    %199 = vmatmul.mubr.f32.gmra.mrb[0].mxu0 %v100
    %v200 = vpop.f32.mrb[0].mxu0
    %v201 = vadd.f32 0.0, %v200
    %v202 = vpop.f32.mrb[0].mxu0
    %203 = vmatprep.mubr.f32.mxu0 0.0
    %204 = vmatmul.mubr.f32.gmra.mrb[0].mxu0 %v103
    %v205 = vpop.f32.mrb[0].mxu0
    %v206 = vadd.f32 0.0, %v205
    %v207 = vpop.f32.mrb[0].mxu0
    %208 = vmatprep.mubr.f32.mxu0 0.0
    %209 = vmatmul.mubr.f32.gmra.mrb[0].mxu0 %v106
    %v210 = vpop.f32.mrb[0].mxu0
    %v211 = vadd.f32 0.0, %v210
    %v212 = vpop.f32.mrb[0].mxu0
    %213 = vmatprep.mubr.f32.mxu0 0.0
    %214 = vmatmul.mubr.f32.gmra.mrb[0].mxu0 %v109
    %v215 = vpop.f32.mrb[0].mxu0
    %v216 = vadd.f32 0.0, %v215
    %v217 = vpop.f32.mrb[0].mxu0
    %218 = vdwg.mxu0
    %vm219 = vcmask 39936
    %v220 = vsel %vm219, %v181, -inf
    %221 = vmax.xlane.f32.xlu0 %v220
    %v222 = vpop.xlane.xlu0 %221
    %v223 = vsel %vm219, %v186, -inf
    %224 = vmax.xlane.f32.xlu0 %v223
    %v225 = vpop.xlane.xlu0 %224
    %v226 = vsel %vm219, %v191, -inf
    %227 = vmax.xlane.f32.xlu0 %v226
    %v228 = vpop.xlane.xlu0 %227
    %v229 = vsel %vm219, %v196, -inf
    %230 = vmax.xlane.f32.xlu0 %v229
    %v231 = vpop.xlane.xlu0 %230
    %v232 = vsel %vm219, %v201, -inf
    %233 = vmax.xlane.f32.xlu0 %v232
    %v234 = vpop.xlane.xlu0 %233
    %v235 = vsel %vm219, %v206, -inf
    %236 = vmax.xlane.f32.xlu0 %v235
    %v237 = vpop.xlane.xlu0 %236
    %v238 = vsel %vm219, %v211, -inf
    %239 = vmax.xlane.f32.xlu0 %v238
    %v240 = vpop.xlane.xlu0 %239
    %v241 = vsel %vm219, %v216, -inf
    %242 = vmax.xlane.f32.xlu0 %v241
    %v243 = vpop.xlane.xlu0 %242
    %v244 = vsub.f32 %v181, %v222
    %v245 = vsub.f32 %v186, %v225
    %v246 = vsub.f32 %v191, %v228
    %v247 = vsub.f32 %v196, %v231
    %v248 = vsub.f32 %v201, %v234
    %v249 = vsub.f32 %v206, %v237
    %v250 = vsub.f32 %v211, %v240
    %v251 = vsub.f32 %v216, %v243
    %v252 = vmul.f32 %v244, 1.442695
    %v253 = vpow.pop %v252
    %v254 = vmul.f32 %v245, 1.442695
    %v255 = vpow.pop %v254
    %v256 = vmul.f32 %v246, 1.442695
    %v257 = vpow.pop %v256
    %v258 = vmul.f32 %v247, 1.442695
    %v259 = vpow.pop %v258
    %v260 = vmul.f32 %v248, 1.442695
    %v261 = vpow.pop %v260
    %v262 = vmul.f32 %v249, 1.442695
    %v263 = vpow.pop %v262
    %v264 = vmul.f32 %v250, 1.442695
    %v265 = vpow.pop %v264
    %v266 = vmul.f32 %v251, 1.442695
    %v267 = vpow.pop %v266
    %v268 = vsel %vm219, %v253, 0.0
    %269 = vadd.xlane.f32.xlu0 %v268
    %v270 = vpop.xlane.xlu0 %269
    %v271 = vsel %vm219, %v255, 0.0
    %272 = vadd.xlane.f32.xlu0 %v271
    %v273 = vpop.xlane.xlu0 %272
    %v274 = vsel %vm219, %v257, 0.0
    %275 = vadd.xlane.f32.xlu0 %v274
    %v276 = vpop.xlane.xlu0 %275
    %v277 = vsel %vm219, %v259, 0.0
    %278 = vadd.xlane.f32.xlu0 %v277
    %v279 = vpop.xlane.xlu0 %278
    %v280 = vsel %vm219, %v261, 0.0
    %281 = vadd.xlane.f32.xlu0 %v280
    %v282 = vpop.xlane.xlu0 %281
    %v283 = vsel %vm219, %v263, 0.0
    %284 = vadd.xlane.f32.xlu0 %v283
    %v285 = vpop.xlane.xlu0 %284
    %v286 = vsel %vm219, %v265, 0.0
    %287 = vadd.xlane.f32.xlu0 %v286
    %v288 = vpop.xlane.xlu0 %287
    %v289 = vsel %vm219, %v267, 0.0
    %290 = vadd.xlane.f32.xlu0 %v289
    %v291 = vpop.xlane.xlu0 %290
    %v292 = vrcp.pop %v270
    %v293 = vrcp.pop %v273
    %v294 = vrcp.pop %v276
    %v295 = vrcp.pop %v279
    %v296 = vrcp.pop %v282
    %v297 = vrcp.pop %v285
    %v298 = vrcp.pop %v288
    %v299 = vrcp.pop %v291
    %v300 = vmul.f32 %v253, %v292
    %v301 = vmul.f32 %v255, %v293
    %v302 = vmul.f32 %v257, %v294
    %v303 = vmul.f32 %v259, %v295
    %v304 = vmul.f32 %v261, %v296
    %v305 = vmul.f32 %v263, %v297
    %v306 = vmul.f32 %v265, %v298
    %v307 = vmul.f32 %v267, %v299
    %309 = vset.pattern.permute.xlu0 0
    %310 = vperm.xlu0 %309, %v300
    %v311 = vpop.permute.xlu0 %310
    %314 = vset.pattern.permute.xlu0 0
    %315 = vperm.xlu0 %314, %v301
    %v316 = vpop.permute.xlu0 %315
    %319 = vset.pattern.permute.xlu0 0
    %320 = vperm.xlu0 %319, %v302
    %v321 = vpop.permute.xlu0 %320
    %324 = vset.pattern.permute.xlu0 0
    %325 = vperm.xlu0 %324, %v303
    %v326 = vpop.permute.xlu0 %325
    %329 = vset.pattern.permute.xlu0 0
    %330 = vperm.xlu0 %329, %v304
    %v331 = vpop.permute.xlu0 %330
    %334 = vset.pattern.permute.xlu0 0
    %335 = vperm.xlu0 %334, %v305
    %v336 = vpop.permute.xlu0 %335
    %339 = vset.pattern.permute.xlu0 0
    %340 = vperm.xlu0 %339, %v306
    %v341 = vpop.permute.xlu0 %340
    %344 = vset.pattern.permute.xlu0 0
    %345 = vperm.xlu0 %344, %v307
    %v346 = vpop.permute.xlu0 %345
    %v348 = vmul.f32 %v311, %v64
    %v349 = vmul.f32 %v316, %v65
    %v350 = vmul.f32 %v321, %v66
    %v351 = vmul.f32 %v326, %v67
    %v352 = vmul.f32 %v331, %v68
    %v353 = vmul.f32 %v336, %v69
    %v354 = vmul.f32 %v341, %v70
    %v355 = vmul.f32 %v346, %v71
    %356 = vset.pattern.permute.xlu0 1
    %357 = vperm.xlu0 %356, %v300
    %v358 = vpop.permute.xlu0 %357
    %360 = vset.pattern.permute.xlu0 1
    %361 = vperm.xlu0 %360, %v301
    %v362 = vpop.permute.xlu0 %361
    %364 = vset.pattern.permute.xlu0 1
    %365 = vperm.xlu0 %364, %v302
    %v366 = vpop.permute.xlu0 %365
    %368 = vset.pattern.permute.xlu0 1
    %369 = vperm.xlu0 %368, %v303
    %v370 = vpop.permute.xlu0 %369
    %372 = vset.pattern.permute.xlu0 1
    %373 = vperm.xlu0 %372, %v304
    %v374 = vpop.permute.xlu0 %373
    %376 = vset.pattern.permute.xlu0 1
    %377 = vperm.xlu0 %376, %v305
    %v378 = vpop.permute.xlu0 %377
    %380 = vset.pattern.permute.xlu0 1
    %381 = vperm.xlu0 %380, %v306
    %v382 = vpop.permute.xlu0 %381
    %384 = vset.pattern.permute.xlu0 1
    %385 = vperm.xlu0 %384, %v307
    %v386 = vpop.permute.xlu0 %385
    %v388 = vmul.f32 %v358, %v64
    %v389 = vmul.f32 %v362, %v65
    %v390 = vmul.f32 %v366, %v66
    %v391 = vmul.f32 %v370, %v67
    %v392 = vmul.f32 %v374, %v68
    %v393 = vmul.f32 %v378, %v69
    %v394 = vmul.f32 %v382, %v70
    %v395 = vmul.f32 %v386, %v71
    %396 = vset.pattern.permute.xlu0 2
    %397 = vperm.xlu0 %396, %v300
    %v398 = vpop.permute.xlu0 %397
    %400 = vset.pattern.permute.xlu0 2
    %401 = vperm.xlu0 %400, %v301
    %v402 = vpop.permute.xlu0 %401
    %404 = vset.pattern.permute.xlu0 2
    %405 = vperm.xlu0 %404, %v302
    %v406 = vpop.permute.xlu0 %405
    %408 = vset.pattern.permute.xlu0 2
    %409 = vperm.xlu0 %408, %v303
    %v410 = vpop.permute.xlu0 %409
    %412 = vset.pattern.permute.xlu0 2
    %413 = vperm.xlu0 %412, %v304
    %v414 = vpop.permute.xlu0 %413
    %416 = vset.pattern.permute.xlu0 2
    %417 = vperm.xlu0 %416, %v305
    %v418 = vpop.permute.xlu0 %417
    %420 = vset.pattern.permute.xlu0 2
    %421 = vperm.xlu0 %420, %v306
    %v422 = vpop.permute.xlu0 %421
    %424 = vset.pattern.permute.xlu0 2
    %425 = vperm.xlu0 %424, %v307
    %v426 = vpop.permute.xlu0 %425
    %v428 = vmul.f32 %v398, %v64
    %v429 = vmul.f32 %v402, %v65
    %v430 = vmul.f32 %v406, %v66
    %v431 = vmul.f32 %v410, %v67
    %v432 = vmul.f32 %v414, %v68
    %v433 = vmul.f32 %v418, %v69
    %v434 = vmul.f32 %v422, %v70
    %v435 = vmul.f32 %v426, %v71
    %436 = vset.pattern.permute.xlu0 3
    %437 = vperm.xlu0 %436, %v300
    %v438 = vpop.permute.xlu0 %437
    %440 = vset.pattern.permute.xlu0 3
    %441 = vperm.xlu0 %440, %v301
    %v442 = vpop.permute.xlu0 %441
    %444 = vset.pattern.permute.xlu0 3
    %445 = vperm.xlu0 %444, %v302
    %v446 = vpop.permute.xlu0 %445
    %448 = vset.pattern.permute.xlu0 3
    %449 = vperm.xlu0 %448, %v303
    %v450 = vpop.permute.xlu0 %449
    %452 = vset.pattern.permute.xlu0 3
    %453 = vperm.xlu0 %452, %v304
    %v454 = vpop.permute.xlu0 %453
    %456 = vset.pattern.permute.xlu0 3
    %457 = vperm.xlu0 %456, %v305
    %v458 = vpop.permute.xlu0 %457
    %460 = vset.pattern.permute.xlu0 3
    %461 = vperm.xlu0 %460, %v306
    %v462 = vpop.permute.xlu0 %461
    %464 = vset.pattern.permute.xlu0 3
    %465 = vperm.xlu0 %464, %v307
    %v466 = vpop.permute.xlu0 %465
    %v468 = vmul.f32 %v438, %v64
    %v469 = vmul.f32 %v442, %v65
    %v470 = vmul.f32 %v446, %v66
    %v471 = vmul.f32 %v450, %v67
    %v472 = vmul.f32 %v454, %v68
    %v473 = vmul.f32 %v458, %v69
    %v474 = vmul.f32 %v462, %v70
    %v475 = vmul.f32 %v466, %v71
    %476 = vset.pattern.permute.xlu0 4
    %477 = vperm.xlu0 %476, %v300
    %v478 = vpop.permute.xlu0 %477
    %480 = vset.pattern.permute.xlu0 4
    %481 = vperm.xlu0 %480, %v301
    %v482 = vpop.permute.xlu0 %481
    %484 = vset.pattern.permute.xlu0 4
    %485 = vperm.xlu0 %484, %v302
    %v486 = vpop.permute.xlu0 %485
    %488 = vset.pattern.permute.xlu0 4
    %489 = vperm.xlu0 %488, %v303
    %v490 = vpop.permute.xlu0 %489
    %492 = vset.pattern.permute.xlu0 4
    %493 = vperm.xlu0 %492, %v304
    %v494 = vpop.permute.xlu0 %493
    %496 = vset.pattern.permute.xlu0 4
    %497 = vperm.xlu0 %496, %v305
    %v498 = vpop.permute.xlu0 %497
    %500 = vset.pattern.permute.xlu0 4
    %501 = vperm.xlu0 %500, %v306
    %v502 = vpop.permute.xlu0 %501
    %504 = vset.pattern.permute.xlu0 4
    %505 = vperm.xlu0 %504, %v307
    %v506 = vpop.permute.xlu0 %505
    %v508 = vmul.f32 %v478, %v64
    %v509 = vmul.f32 %v482, %v65
    %v510 = vmul.f32 %v486, %v66
    %v511 = vmul.f32 %v490, %v67
    %v512 = vmul.f32 %v494, %v68
    %v513 = vmul.f32 %v498, %v69
    %v514 = vmul.f32 %v502, %v70
    %v515 = vmul.f32 %v506, %v71
    %vm516 = vcmask 31744
    %v517 = vsel %vm516, %v348, %v388
    %v518 = vsel %vm516, %v349, %v389
    %v519 = vsel %vm516, %v350, %v390
    %v520 = vsel %vm516, %v351, %v391
    %v521 = vsel %vm516, %v352, %v392
    %v522 = vsel %vm516, %v353, %v393
    %v523 = vsel %vm516, %v354, %v394
    %v524 = vsel %vm516, %v355, %v395
    %vm525 = vcmask 64512
    %v526 = vsel %vm525, %v517, %v428
    %v527 = vsel %vm525, %v518, %v429
    %v528 = vsel %vm525, %v519, %v430
    %v529 = vsel %vm525, %v520, %v431
    %v530 = vsel %vm525, %v521, %v432
    %v531 = vsel %vm525, %v522, %v433
    %v532 = vsel %vm525, %v523, %v434
    %v533 = vsel %vm525, %v524, %v435
    %vm534 = vcmask 97280
    %v535 = vsel %vm534, %v526, %v468
    %v536 = vsel %vm534, %v527, %v469
    %v537 = vsel %vm534, %v528, %v470
    %v538 = vsel %vm534, %v529, %v471
    %v539 = vsel %vm534, %v530, %v472
    %v540 = vsel %vm534, %v531, %v473
    %v541 = vsel %vm534, %v532, %v474
    %v542 = vsel %vm534, %v533, %v475
    %vm543 = vcmask 130048
    %v544 = vsel %vm543, %v535, %v508
    %v545 = vsel %vm543, %v536, %v509
    %v546 = vsel %vm543, %v537, %v510
    %v547 = vsel %vm543, %v538, %v511
    %v548 = vsel %vm543, %v539, %v512
    %v549 = vsel %vm543, %v540, %v513
    %v550 = vsel %vm543, %v541, %v514
    %v551 = vsel %vm543, %v542, %v515
    %v552 = vld [vmem:[#allocation7 + $0x14] sm:$0x1]
    %v553 = vlaneseq
    %v554 = vshrl.u32 %v553, 7
    %v555 = vsub.s32 0, %v554
    %v556 = vrot.slane %v552, %v555
    %v558 = vsel %vm86, %v544, 0
    %v561 = vsel %vm86, %v545, 0
    %v564 = vsel %vm86, %v546, 0
    %v567 = vsel %vm86, %v547, 0
    %v570 = vsel %vm86, %v548, 0
    %v573 = vsel %vm86, %v549, 0
    %v576 = vsel %vm86, %v550, 0
    %v579 = vsel %vm86, %v551, 0
    %v581 = vsel %vm111, %v74, 0
    %583 = vmatprep.subr.mxu0 0.0
    %584 = vmatpush1.msra.mxu0 %v72
    %585 = vmatprep.subr.mxu0 0.0
    %586 = vmatpush1.msra.mxu0 %v73
    %587 = vmatprep.subr.mxu0 0.0
    %588 = vmatpush1.msra.mxu0 %v581
    %589 = vmatprep.subr.mxu0 0.0
    %590 = vmatpush1.msra.mxu0 0.0
    %591 = vmatprep.subr.mxu0 0.0
    %592 = vmatpush1.msra.mxu0 0.0
    %593 = vmatprep.subr.mxu0 0.0
    %594 = vmatpush1.msra.mxu0 0.0
    %595 = vmatprep.subr.mxu0 0.0
    %596 = vmatpush1.msra.mxu0 0.0
    %597 = vmatprep.subr.mxu0 0.0
    %598 = vmatpush1.msra.mxu0 0.0
    %599 = vmatprep.subr.mxu0 0.0
    %600 = vmatpush1.msra.mxu0 0.0
    %601 = vmatprep.subr.mxu0 0.0
    %602 = vmatpush1.msra.mxu0 0.0
    %603 = vmatprep.subr.mxu0 0.0
    %604 = vmatpush1.msra.mxu0 0.0
    %605 = vmatprep.subr.mxu0 0.0
    %606 = vmatpush1.msra.mxu0 0.0
    %607 = vmatprep.subr.mxu0 0.0
    %608 = vmatpush1.msra.mxu0 0.0
    %609 = vmatprep.subr.mxu0 0.0
    %610 = vmatpush1.msra.mxu0 0.0
    %611 = vmatprep.subr.mxu0 0.0
    %612 = vmatpush1.msra.mxu0 0.0
    %613 = vmatprep.subr.mxu0 0.0
    %614 = vmatpush1.msra.mxu0 0.0
    %615 = vmatprep.subr.mxu0 0.0
    %616 = vmatpush1.msra.mxu0 0.0
    %617 = vmatprep.subr.mxu0 0.0
    %618 = vmatpush1.msra.mxu0 0.0
    %619 = vmatprep.subr.mxu0 0.0
    %620 = vmatpush1.msra.mxu0 0.0
    %621 = vmatprep.subr.mxu0 0.0
    %622 = vmatpush1.msra.mxu0 0.0
    %623 = vmatprep.subr.mxu0 0.0
    %624 = vmatpush1.msra.mxu0 0.0
    %625 = vmatprep.subr.mxu0 0.0
    %626 = vmatpush1.msra.mxu0 0.0
    %627 = vmatprep.subr.mxu0 0.0
    %628 = vmatpush1.msra.mxu0 0.0
    %629 = vmatprep.subr.mxu0 0.0
    %630 = vmatpush1.msra.mxu0 0.0
    %631 = vmatprep.subr.mxu0 0.0
    %632 = vmatpush1.msra.mxu0 0.0
    %633 = vmatprep.subr.mxu0 0.0
    %634 = vmatpush1.msra.mxu0 0.0
    %635 = vmatprep.subr.mxu0 0.0
    %636 = vmatpush1.msra.mxu0 0.0
    %637 = vmatprep.subr.mxu0 0.0
    %638 = vmatpush1.msra.mxu0 0.0
    %639 = vmatprep.subr.mxu0 0.0
    %640 = vmatpush1.msra.mxu0 0.0
    %641 = vmatprep.subr.mxu0 0.0
    %642 = vmatpush1.msra.mxu0 0.0
    %643 = vmatprep.subr.mxu0 0.0
    %644 = vmatpush1.msra.mxu0 0.0
    %645 = vmatprep.subr.mxu0 0.0
    %646 = vmatpush1.msra.mxu0 0.0
    %647 = vmatprep.mubr.f32.mxu0 0.0
    %648 = vmatmul.mubr.f32.gmra.mrb[0].mxu0 %v558
    %v649 = vpop.f32.mrb[0].mxu0
    %v650 = vadd.f32 %v556, %v649
    %v651 = vpop.f32.mrb[0].mxu0
    %652 = vmatprep.mubr.f32.mxu0 0.0
    %653 = vmatmul.mubr.f32.gmra.mrb[0].mxu0 %v561
    %v654 = vpop.f32.mrb[0].mxu0
    %v655 = vadd.f32 %v556, %v654
    %v656 = vpop.f32.mrb[0].mxu0
    %657 = vmatprep.mubr.f32.mxu0 0.0
    %658 = vmatmul.mubr.f32.gmra.mrb[0].mxu0 %v564
    %v659 = vpop.f32.mrb[0].mxu0
    %v660 = vadd.f32 %v556, %v659
    %v661 = vpop.f32.mrb[0].mxu0
    %662 = vmatprep.mubr.f32.mxu0 0.0
    %663 = vmatmul.mubr.f32.gmra.mrb[0].mxu0 %v567
    %v664 = vpop.f32.mrb[0].mxu0
    %v665 = vadd.f32 %v556, %v664
    %v666 = vpop.f32.mrb[0].mxu0
    %667 = vmatprep.mubr.f32.mxu0 0.0
    %668 = vmatmul.mubr.f32.gmra.mrb[0].mxu0 %v570
    %v669 = vpop.f32.mrb[0].mxu0
    %v670 = vadd.f32 %v556, %v669
    %v671 = vpop.f32.mrb[0].mxu0
    %672 = vmatprep.mubr.f32.mxu0 0.0
    %673 = vmatmul.mubr.f32.gmra.mrb[0].mxu0 %v573
    %v674 = vpop.f32.mrb[0].mxu0
    %v675 = vadd.f32 %v556, %v674
    %v676 = vpop.f32.mrb[0].mxu0
    %677 = vmatprep.mubr.f32.mxu0 0.0
    %678 = vmatmul.mubr.f32.gmra.mrb[0].mxu0 %v576
    %v679 = vpop.f32.mrb[0].mxu0
    %v680 = vadd.f32 %v556, %v679
    %v681 = vpop.f32.mrb[0].mxu0
    %682 = vmatprep.mubr.f32.mxu0 0.0
    %683 = vmatmul.mubr.f32.gmra.mrb[0].mxu0 %v579
    %v684 = vpop.f32.mrb[0].mxu0
    %v685 = vadd.f32 %v556, %v684
    %v686 = vpop.f32.mrb[0].mxu0
    %687 = vdwg.mxu0
    %v688 = vld [vmem:[#allocation7 + $0x18] sm:$0xff]
    %v689 = vld [vmem:[#allocation7 + $0x20] sm:$0xff]
    %v690 = vld [vmem:[#allocation7 + $0x28] sm:$0xff]
    %v691 = vld [vmem:[#allocation7 + $0x30] sm:$0xff]
    %vm692 = vcmask 261120
    %v694 = vsel %vm692, %v650, 0
    %v697 = vsel %vm692, %v655, 0
    %v700 = vsel %vm692, %v660, 0
    %v703 = vsel %vm692, %v665, 0
    %v706 = vsel %vm692, %v670, 0
    %v709 = vsel %vm692, %v675, 0
    %v712 = vsel %vm692, %v680, 0
    %v715 = vsel %vm692, %v685, 0
    %717 = vmatprep.subr.mxu0 0.0
    %718 = vmatpush1.msra.mxu0 %v688
    %719 = vmatprep.subr.mxu0 0.0
    %720 = vmatpush1.msra.mxu0 %v689
    %721 = vmatprep.subr.mxu0 0.0
    %722 = vmatpush1.msra.mxu0 %v690
    %723 = vmatprep.subr.mxu0 0.0
    %724 = vmatpush1.msra.mxu0 %v691
    %725 = vmatprep.subr.mxu0 0.0
    %726 = vmatpush1.msra.mxu0 0.0
    %727 = vmatprep.subr.mxu0 0.0
    %728 = vmatpush1.msra.mxu0 0.0
    %729 = vmatprep.subr.mxu0 0.0
    %730 = vmatpush1.msra.mxu0 0.0
    %731 = vmatprep.subr.mxu0 0.0
    %732 = vmatpush1.msra.mxu0 0.0
    %733 = vmatprep.subr.mxu0 0.0
    %734 = vmatpush1.msra.mxu0 0.0
    %735 = vmatprep.subr.mxu0 0.0
    %736 = vmatpush1.msra.mxu0 0.0
    %737 = vmatprep.subr.mxu0 0.0
    %738 = vmatpush1.msra.mxu0 0.0
    %739 = vmatprep.subr.mxu0 0.0
    %740 = vmatpush1.msra.mxu0 0.0
    %741 = vmatprep.subr.mxu0 0.0
    %742 = vmatpush1.msra.mxu0 0.0
    %743 = vmatprep.subr.mxu0 0.0
    %744 = vmatpush1.msra.mxu0 0.0
    %745 = vmatprep.subr.mxu0 0.0
    %746 = vmatpush1.msra.mxu0 0.0
    %747 = vmatprep.subr.mxu0 0.0
    %748 = vmatpush1.msra.mxu0 0.0
    %749 = vmatprep.subr.mxu0 0.0
    %750 = vmatpush1.msra.mxu0 0.0
    %751 = vmatprep.subr.mxu0 0.0
    %752 = vmatpush1.msra.mxu0 0.0
    %753 = vmatprep.subr.mxu0 0.0
    %754 = vmatpush1.msra.mxu0 0.0
    %755 = vmatprep.subr.mxu0 0.0
    %756 = vmatpush1.msra.mxu0 0.0
    %757 = vmatprep.subr.mxu0 0.0
    %758 = vmatpush1.msra.mxu0 0.0
    %759 = vmatprep.subr.mxu0 0.0
    %760 = vmatpush1.msra.mxu0 0.0
    %761 = vmatprep.subr.mxu0 0.0
    %762 = vmatpush1.msra.mxu0 0.0
    %763 = vmatprep.subr.mxu0 0.0
    %764 = vmatpush1.msra.mxu0 0.0
    %765 = vmatprep.subr.mxu0 0.0
    %766 = vmatpush1.msra.mxu0 0.0
    %767 = vmatprep.subr.mxu0 0.0
    %768 = vmatpush1.msra.mxu0 0.0
    %769 = vmatprep.subr.mxu0 0.0
    %770 = vmatpush1.msra.mxu0 0.0
    %771 = vmatprep.subr.mxu0 0.0
    %772 = vmatpush1.msra.mxu0 0.0
    %773 = vmatprep.subr.mxu0 0.0
    %774 = vmatpush1.msra.mxu0 0.0
    %775 = vmatprep.subr.mxu0 0.0
    %776 = vmatpush1.msra.mxu0 0.0
    %777 = vmatprep.subr.mxu0 0.0
    %778 = vmatpush1.msra.mxu0 0.0
    %779 = vmatprep.subr.mxu0 0.0
    %780 = vmatpush1.msra.mxu0 0.0
    %781 = vmatprep.mubr.f32.mxu0 0.0
    %782 = vmatmul.mubr.f32.gmra.mrb[0].mxu0 %v694
    %v783 = vpop.f32.mrb[0].mxu0
    %v784 = vadd.f32 0.0, %v783
    %v785 = vpop.f32.mrb[0].mxu0
    %786 = vmatprep.mubr.f32.mxu0 0.0
    %787 = vmatmul.mubr.f32.gmra.mrb[0].mxu0 %v697
    %v788 = vpop.f32.mrb[0].mxu0
    %v789 = vadd.f32 0.0, %v788
    %v790 = vpop.f32.mrb[0].mxu0
    %791 = vmatprep.mubr.f32.mxu0 0.0
    %792 = vmatmul.mubr.f32.gmra.mrb[0].mxu0 %v700
    %v793 = vpop.f32.mrb[0].mxu0
    %v794 = vadd.f32 0.0, %v793
    %v795 = vpop.f32.mrb[0].mxu0
    %796 = vmatprep.mubr.f32.mxu0 0.0
    %797 = vmatmul.mubr.f32.gmra.mrb[0].mxu0 %v703
    %v798 = vpop.f32.mrb[0].mxu0
    %v799 = vadd.f32 0.0, %v798
    %v800 = vpop.f32.mrb[0].mxu0
    %801 = vmatprep.mubr.f32.mxu0 0.0
    %802 = vmatmul.mubr.f32.gmra.mrb[0].mxu0 %v706
    %v803 = vpop.f32.mrb[0].mxu0
    %v804 = vadd.f32 0.0, %v803
    %v805 = vpop.f32.mrb[0].mxu0
    %806 = vmatprep.mubr.f32.mxu0 0.0
    %807 = vmatmul.mubr.f32.gmra.mrb[0].mxu0 %v709
    %v808 = vpop.f32.mrb[0].mxu0
    %v809 = vadd.f32 0.0, %v808
    %v810 = vpop.f32.mrb[0].mxu0
    %811 = vmatprep.mubr.f32.mxu0 0.0
    %812 = vmatmul.mubr.f32.gmra.mrb[0].mxu0 %v712
    %v813 = vpop.f32.mrb[0].mxu0
    %v814 = vadd.f32 0.0, %v813
    %v815 = vpop.f32.mrb[0].mxu0
    %816 = vmatprep.mubr.f32.mxu0 0.0
    %817 = vmatmul.mubr.f32.gmra.mrb[0].mxu0 %v715
    %v818 = vpop.f32.mrb[0].mxu0
    %v819 = vadd.f32 0.0, %v818
    %v820 = vpop.f32.mrb[0].mxu0
    %821 = vdwg.mxu0
    %vm822 = vcmask 523264
    %v824 = vsel %vm822, %v56, 0
    %v827 = vsel %vm822, %v57, 0
    %v830 = vsel %vm822, %v58, 0
    %v833 = vsel %vm822, %v59, 0
    %v836 = vsel %vm822, %v60, 0
    %v839 = vsel %vm822, %v61, 0
    %v842 = vsel %vm822, %v62, 0
    %v845 = vsel %vm822, %v63, 0
    %847 = vmatprep.subr.mxu0 0.0
    %848 = vmatpush1.msra.mxu0 %v784
    %849 = vmatprep.subr.mxu0 0.0
    %850 = vmatpush1.msra.mxu0 %v789
    %851 = vmatprep.subr.mxu0 0.0
    %852 = vmatpush1.msra.mxu0 %v794
    %853 = vmatprep.subr.mxu0 0.0
    %854 = vmatpush1.msra.mxu0 %v799
    %855 = vmatprep.subr.mxu0 0.0
    %856 = vmatpush1.msra.mxu0 %v804
    %857 = vmatprep.subr.mxu0 0.0
    %858 = vmatpush1.msra.mxu0 %v809
    %859 = vmatprep.subr.mxu0 0.0
    %860 = vmatpush1.msra.mxu0 %v814
    %861 = vmatprep.subr.mxu0 0.0
    %862 = vmatpush1.msra.mxu0 %v819
    %863 = vmatprep.subr.mxu0 0.0
    %864 = vmatpush1.msra.mxu0 0.0
    %865 = vmatprep.subr.mxu0 0.0
    %866 = vmatpush1.msra.mxu0 0.0
    %867 = vmatprep.subr.mxu0 0.0
    %868 = vmatpush1.msra.mxu0 0.0
    %869 = vmatprep.subr.mxu0 0.0
    %870 = vmatpush1.msra.mxu0 0.0
    %871 = vmatprep.subr.mxu0 0.0
    %872 = vmatpush1.msra.mxu0 0.0
    %873 = vmatprep.subr.mxu0 0.0
    %874 = vmatpush1.msra.mxu0 0.0
    %875 = vmatprep.subr.mxu0 0.0
    %876 = vmatpush1.msra.mxu0 0.0
    %877 = vmatprep.subr.mxu0 0.0
    %878 = vmatpush1.msra.mxu0 0.0
    %879 = vmatprep.subr.mxu0 0.0
    %880 = vmatpush1.msra.mxu0 0.0
    %881 = vmatprep.subr.mxu0 0.0
    %882 = vmatpush1.msra.mxu0 0.0
    %883 = vmatprep.subr.mxu0 0.0
    %884 = vmatpush1.msra.mxu0 0.0
    %885 = vmatprep.subr.mxu0 0.0
    %886 = vmatpush1.msra.mxu0 0.0
    %887 = vmatprep.subr.mxu0 0.0
    %888 = vmatpush1.msra.mxu0 0.0
    %889 = vmatprep.subr.mxu0 0.0
    %890 = vmatpush1.msra.mxu0 0.0
    %891 = vmatprep.subr.mxu0 0.0
    %892 = vmatpush1.msra.mxu0 0.0
    %893 = vmatprep.subr.mxu0 0.0
    %894 = vmatpush1.msra.mxu0 0.0
    %895 = vmatprep.subr.mxu0 0.0
    %896 = vmatpush1.msra.mxu0 0.0
    %897 = vmatprep.subr.mxu0 0.0
    %898 = vmatpush1.msra.mxu0 0.0
    %899 = vmatprep.subr.mxu0 0.0
    %900 = vmatpush1.msra.mxu0 0.0
    %901 = vmatprep.subr.mxu0 0.0
    %902 = vmatpush1.msra.mxu0 0.0
    %903 = vmatprep.subr.mxu0 0.0
    %904 = vmatpush1.msra.mxu0 0.0
    %905 = vmatprep.subr.mxu0 0.0
    %906 = vmatpush1.msra.mxu0 0.0
    %907 = vmatprep.subr.mxu0 0.0
    %908 = vmatpush1.msra.mxu0 0.0
    %909 = vmatprep.subr.mxu0 0.0
    %910 = vmatpush1.msra.mxu0 0.0
    %911 = vmatprep.mubr.f32.mxu0 0.0
    %912 = vmatmul.mubr.f32.gmra.mrb[0].mxu0 %v824
    %v913 = vpop.f32.mrb[0].mxu0
    %v914 = vadd.f32 0.0, %v913
    %v915 = vpop.f32.mrb[0].mxu0
    %916 = vmatprep.mubr.f32.mxu0 0.0
    %917 = vmatmul.mubr.f32.gmra.mrb[0].mxu0 %v827
    %v918 = vpop.f32.mrb[0].mxu0
    %v919 = vadd.f32 0.0, %v918
    %v920 = vpop.f32.mrb[0].mxu0
    %921 = vmatprep.mubr.f32.mxu0 0.0
    %922 = vmatmul.mubr.f32.gmra.mrb[0].mxu0 %v830
    %v923 = vpop.f32.mrb[0].mxu0
    %v924 = vadd.f32 0.0, %v923
    %v925 = vpop.f32.mrb[0].mxu0
    %926 = vmatprep.mubr.f32.mxu0 0.0
    %927 = vmatmul.mubr.f32.gmra.mrb[0].mxu0 %v833
    %v928 = vpop.f32.mrb[0].mxu0
    %v929 = vadd.f32 0.0, %v928
    %v930 = vpop.f32.mrb[0].mxu0
    %931 = vmatprep.mubr.f32.mxu0 0.0
    %932 = vmatmul.mubr.f32.gmra.mrb[0].mxu0 %v836
    %v933 = vpop.f32.mrb[0].mxu0
    %v934 = vadd.f32 0.0, %v933
    %v935 = vpop.f32.mrb[0].mxu0
    %936 = vmatprep.mubr.f32.mxu0 0.0
    %937 = vmatmul.mubr.f32.gmra.mrb[0].mxu0 %v839
    %v938 = vpop.f32.mrb[0].mxu0
    %v939 = vadd.f32 0.0, %v938
    %v940 = vpop.f32.mrb[0].mxu0
    %941 = vmatprep.mubr.f32.mxu0 0.0
    %942 = vmatmul.mubr.f32.gmra.mrb[0].mxu0 %v842
    %v943 = vpop.f32.mrb[0].mxu0
    %v944 = vadd.f32 0.0, %v943
    %v945 = vpop.f32.mrb[0].mxu0
    %946 = vmatprep.mubr.f32.mxu0 0.0
    %947 = vmatmul.mubr.f32.gmra.mrb[0].mxu0 %v845
    %v948 = vpop.f32.mrb[0].mxu0
    %v949 = vadd.f32 0.0, %v948
    %v950 = vpop.f32.mrb[0].mxu0
    %951 = vdwg.mxu0
    %v952 = vld [vmem:[#allocation5 + $0x8] sm:$0xff]
    %v953 = vld [vmem:[#allocation5 + $0x18] sm:$0xff]
    %v954 = vld [vmem:[#allocation5 + $0x28] sm:$0xff]
    %v955 = vld [vmem:[#allocation5 + $0x38] sm:$0xff]
    %v956 = vld [vmem:[#allocation5 + $0x48] sm:$0xff]
    %v957 = vld [vmem:[#allocation5 + $0x58] sm:$0xff]
    %v958 = vld [vmem:[#allocation5 + $0x68] sm:$0xff]
    %v959 = vld [vmem:[#allocation5 + $0x78] sm:$0xff]
    %v960 = vmul.f32 %v914, %v952
    %v961 = vmul.f32 %v919, %v953
    %v962 = vmul.f32 %v924, %v954
    %v963 = vmul.f32 %v929, %v955
    %v964 = vmul.f32 %v934, %v956
    %v965 = vmul.f32 %v939, %v957
    %v966 = vmul.f32 %v944, %v958
    %v967 = vmul.f32 %v949, %v959
    %976 = vrot.lane.b32.xlu0 %v952, 96
    %v977 = vpop.permute.xlu0 %976
    %978 = vrot.lane.b32.xlu0 %v953, 96
    %v979 = vpop.permute.xlu0 %978
    %980 = vrot.lane.b32.xlu0 %v954, 96
    %v981 = vpop.permute.xlu0 %980
    %982 = vrot.lane.b32.xlu0 %v955, 96
    %v983 = vpop.permute.xlu0 %982
    %984 = vrot.lane.b32.xlu0 %v956, 96
    %v985 = vpop.permute.xlu0 %984
    %986 = vrot.lane.b32.xlu0 %v957, 96
    %v987 = vpop.permute.xlu0 %986
    %988 = vrot.lane.b32.xlu0 %v958, 96
    %v989 = vpop.permute.xlu0 %988
    %990 = vrot.lane.b32.xlu0 %v959, 96
    %v991 = vpop.permute.xlu0 %990
    %v1000 = vadd.f32 %v960, %v977
    %v1001 = vadd.f32 %v961, %v979
    %v1002 = vadd.f32 %v962, %v981
    %v1003 = vadd.f32 %v963, %v983
    %v1004 = vadd.f32 %v964, %v985
    %v1005 = vadd.f32 %v965, %v987
    %v1006 = vadd.f32 %v966, %v989
    %v1007 = vadd.f32 %v967, %v991
    %v1008 = vmax.f32 %v1000, 0.0
    %v1009 = vmax.f32 %v1001, 0.0
    %v1010 = vmax.f32 %v1002, 0.0
    %v1011 = vmax.f32 %v1003, 0.0
    %v1012 = vmax.f32 %v1004, 0.0
    %v1013 = vmax.f32 %v1005, 0.0
    %v1014 = vmax.f32 %v1006, 0.0
    %v1015 = vmax.f32 %v1007, 0.0
    %v1016 = vld [vmem:[#allocation7 + $0x38] sm:$0xff]
    %v1017 = vld [vmem:[#allocation7 + $0x40] sm:$0xff]
    %v1018 = vld [vmem:[#allocation7 + $0x48] sm:$0xff]
    %v1019 = vld [vmem:[#allocation7 + $0x50] sm:$0xff]
    %v1021 = vsel %vm692, %v1008, 0
    %v1024 = vsel %vm692, %v1009, 0
    %v1027 = vsel %vm692, %v1010, 0
    %v1030 = vsel %vm692, %v1011, 0
    %v1033 = vsel %vm692, %v1012, 0
    %v1036 = vsel %vm692, %v1013, 0
    %v1039 = vsel %vm692, %v1014, 0
    %v1042 = vsel %vm692, %v1015, 0
    %1044 = vmatprep.subr.mxu0 0.0
    %1045 = vmatpush1.msra.mxu0 %v1016
    %1046 = vmatprep.subr.mxu0 0.0
    %1047 = vmatpush1.msra.mxu0 %v1017
    %1048 = vmatprep.subr.mxu0 0.0
    %1049 = vmatpush1.msra.mxu0 %v1018
    %1050 = vmatprep.subr.mxu0 0.0
    %1051 = vmatpush1.msra.mxu0 %v1019
    %1052 = vmatprep.subr.mxu0 0.0
    %1053 = vmatpush1.msra.mxu0 0.0
    %1054 = vmatprep.subr.mxu0 0.0
    %1055 = vmatpush1.msra.mxu0 0.0
    %1056 = vmatprep.subr.mxu0 0.0
    %1057 = vmatpush1.msra.mxu0 0.0
    %1058 = vmatprep.subr.mxu0 0.0
    %1059 = vmatpush1.msra.mxu0 0.0
    %1060 = vmatprep.subr.mxu0 0.0
    %1061 = vmatpush1.msra.mxu0 0.0
    %1062 = vmatprep.subr.mxu0 0.0
    %1063 = vmatpush1.msra.mxu0 0.0
    %1064 = vmatprep.subr.mxu0 0.0
    %1065 = vmatpush1.msra.mxu0 0.0
    %1066 = vmatprep.subr.mxu0 0.0
    %1067 = vmatpush1.msra.mxu0 0.0
    %1068 = vmatprep.subr.mxu0 0.0
    %1069 = vmatpush1.msra.mxu0 0.0
    %1070 = vmatprep.subr.mxu0 0.0
    %1071 = vmatpush1.msra.mxu0 0.0
    %1072 = vmatprep.subr.mxu0 0.0
    %1073 = vmatpush1.msra.mxu0 0.0
    %1074 = vmatprep.subr.mxu0 0.0
    %1075 = vmatpush1.msra.mxu0 0.0
    %1076 = vmatprep.subr.mxu0 0.0
    %1077 = vmatpush1.msra.mxu0 0.0
    %1078 = vmatprep.subr.mxu0 0.0
    %1079 = vmatpush1.msra.mxu0 0.0
    %1080 = vmatprep.subr.mxu0 0.0
    %1081 = vmatpush1.msra.mxu0 0.0
    %1082 = vmatprep.subr.mxu0 0.0
    %1083 = vmatpush1.msra.mxu0 0.0
    %1084 = vmatprep.subr.mxu0 0.0
    %1085 = vmatpush1.msra.mxu0 0.0
    %1086 = vmatprep.subr.mxu0 0.0
    %1087 = vmatpush1.msra.mxu0 0.0
    %1088 = vmatprep.subr.mxu0 0.0
    %1089 = vmatpush1.msra.mxu0 0.0
    %1090 = vmatprep.subr.mxu0 0.0
    %1091 = vmatpush1.msra.mxu0 0.0
    %1092 = vmatprep.subr.mxu0 0.0
    %1093 = vmatpush1.msra.mxu0 0.0
    %1094 = vmatprep.subr.mxu0 0.0
    %1095 = vmatpush1.msra.mxu0 0.0
    %1096 = vmatprep.subr.mxu0 0.0
    %1097 = vmatpush1.msra.mxu0 0.0
    %1098 = vmatprep.subr.mxu0 0.0
    %1099 = vmatpush1.msra.mxu0 0.0
    %1100 = vmatprep.subr.mxu0 0.0
    %1101 = vmatpush1.msra.mxu0 0.0
    %1102 = vmatprep.subr.mxu0 0.0
    %1103 = vmatpush1.msra.mxu0 0.0
    %1104 = vmatprep.subr.mxu0 0.0
    %1105 = vmatpush1.msra.mxu0 0.0
    %1106 = vmatprep.subr.mxu0 0.0
    %1107 = vmatpush1.msra.mxu0 0.0
    %1108 = vmatprep.mubr.f32.mxu0 0.0
    %1109 = vmatmul.mubr.f32.gmra.mrb[0].mxu0 %v1021
    %v1110 = vpop.f32.mrb[0].mxu0
    %v1111 = vadd.f32 0.0, %v1110
    %v1112 = vpop.f32.mrb[0].mxu0
    %1113 = vmatprep.mubr.f32.mxu0 0.0
    %1114 = vmatmul.mubr.f32.gmra.mrb[0].mxu0 %v1024
    %v1115 = vpop.f32.mrb[0].mxu0
    %v1116 = vadd.f32 0.0, %v1115
    %v1117 = vpop.f32.mrb[0].mxu0
    %1118 = vmatprep.mubr.f32.mxu0 0.0
    %1119 = vmatmul.mubr.f32.gmra.mrb[0].mxu0 %v1027
    %v1120 = vpop.f32.mrb[0].mxu0
    %v1121 = vadd.f32 0.0, %v1120
    %v1122 = vpop.f32.mrb[0].mxu0
    %1123 = vmatprep.mubr.f32.mxu0 0.0
    %1124 = vmatmul.mubr.f32.gmra.mrb[0].mxu0 %v1030
    %v1125 = vpop.f32.mrb[0].mxu0
    %v1126 = vadd.f32 0.0, %v1125
    %v1127 = vpop.f32.mrb[0].mxu0
    %1128 = vmatprep.mubr.f32.mxu0 0.0
    %1129 = vmatmul.mubr.f32.gmra.mrb[0].mxu0 %v1033
    %v1130 = vpop.f32.mrb[0].mxu0
    %v1131 = vadd.f32 0.0, %v1130
    %v1132 = vpop.f32.mrb[0].mxu0
    %1133 = vmatprep.mubr.f32.mxu0 0.0
    %1134 = vmatmul.mubr.f32.gmra.mrb[0].mxu0 %v1036
    %v1135 = vpop.f32.mrb[0].mxu0
    %v1136 = vadd.f32 0.0, %v1135
    %v1137 = vpop.f32.mrb[0].mxu0
    %1138 = vmatprep.mubr.f32.mxu0 0.0
    %1139 = vmatmul.mubr.f32.gmra.mrb[0].mxu0 %v1039
    %v1140 = vpop.f32.mrb[0].mxu0
    %v1141 = vadd.f32 0.0, %v1140
    %v1142 = vpop.f32.mrb[0].mxu0
    %1143 = vmatprep.mubr.f32.mxu0 0.0
    %1144 = vmatmul.mubr.f32.gmra.mrb[0].mxu0 %v1042
    %v1145 = vpop.f32.mrb[0].mxu0
    %v1146 = vadd.f32 0.0, %v1145
    %v1147 = vpop.f32.mrb[0].mxu0
    %1148 = vdwg.mxu0
    %1149 = vmatprep.subr.mxu0 0.0
    %1150 = vmatpush1.msra.mxu0 %v1111
    %1151 = vmatprep.subr.mxu0 0.0
    %1152 = vmatpush1.msra.mxu0 %v1116
    %1153 = vmatprep.subr.mxu0 0.0
    %1154 = vmatpush1.msra.mxu0 %v1121
    %1155 = vmatprep.subr.mxu0 0.0
    %1156 = vmatpush1.msra.mxu0 %v1126
    %1157 = vmatprep.subr.mxu0 0.0
    %1158 = vmatpush1.msra.mxu0 %v1131
    %1159 = vmatprep.subr.mxu0 0.0
    %1160 = vmatpush1.msra.mxu0 %v1136
    %1161 = vmatprep.subr.mxu0 0.0
    %1162 = vmatpush1.msra.mxu0 %v1141
    %1163 = vmatprep.subr.mxu0 0.0
    %1164 = vmatpush1.msra.mxu0 %v1146
    %1165 = vmatprep.subr.mxu0 0.0
    %1166 = vmatpush1.msra.mxu0 0.0
    %1167 = vmatprep.subr.mxu0 0.0
    %1168 = vmatpush1.msra.mxu0 0.0
    %1169 = vmatprep.subr.mxu0 0.0
    %1170 = vmatpush1.msra.mxu0 0.0
    %1171 = vmatprep.subr.mxu0 0.0
    %1172 = vmatpush1.msra.mxu0 0.0
    %1173 = vmatprep.subr.mxu0 0.0
    %1174 = vmatpush1.msra.mxu0 0.0
    %1175 = vmatprep.subr.mxu0 0.0
    %1176 = vmatpush1.msra.mxu0 0.0
    %1177 = vmatprep.subr.mxu0 0.0
    %1178 = vmatpush1.msra.mxu0 0.0
    %1179 = vmatprep.subr.mxu0 0.0
    %1180 = vmatpush1.msra.mxu0 0.0
    %1181 = vmatprep.subr.mxu0 0.0
    %1182 = vmatpush1.msra.mxu0 0.0
    %1183 = vmatprep.subr.mxu0 0.0
    %1184 = vmatpush1.msra.mxu0 0.0
    %1185 = vmatprep.subr.mxu0 0.0
    %1186 = vmatpush1.msra.mxu0 0.0
    %1187 = vmatprep.subr.mxu0 0.0
    %1188 = vmatpush1.msra.mxu0 0.0
    %1189 = vmatprep.subr.mxu0 0.0
    %1190 = vmatpush1.msra.mxu0 0.0
    %1191 = vmatprep.subr.mxu0 0.0
    %1192 = vmatpush1.msra.mxu0 0.0
    %1193 = vmatprep.subr.mxu0 0.0
    %1194 = vmatpush1.msra.mxu0 0.0
    %1195 = vmatprep.subr.mxu0 0.0
    %1196 = vmatpush1.msra.mxu0 0.0
    %1197 = vmatprep.subr.mxu0 0.0
    %1198 = vmatpush1.msra.mxu0 0.0
    %1199 = vmatprep.subr.mxu0 0.0
    %1200 = vmatpush1.msra.mxu0 0.0
    %1201 = vmatprep.subr.mxu0 0.0
    %1202 = vmatpush1.msra.mxu0 0.0
    %1203 = vmatprep.subr.mxu0 0.0
    %1204 = vmatpush1.msra.mxu0 0.0
    %1205 = vmatprep.subr.mxu0 0.0
    %1206 = vmatpush1.msra.mxu0 0.0
    %1207 = vmatprep.subr.mxu0 0.0
    %1208 = vmatpush1.msra.mxu0 0.0
    %1209 = vmatprep.subr.mxu0 0.0
    %1210 = vmatpush1.msra.mxu0 0.0
    %1211 = vmatprep.subr.mxu0 0.0
    %1212 = vmatpush1.msra.mxu0 0.0
    %1213 = vmatprep.mubr.f32.mxu0 0.0
    %1214 = vmatmul.mubr.f32.gmra.mrb[0].mxu0 %v824
    %v1215 = vpop.f32.mrb[0].mxu0
    %v1216 = vadd.f32 0.0, %v1215
    %v1217 = vpop.f32.mrb[0].mxu0
    %1218 = vmatprep.mubr.f32.mxu0 0.0
    %1219 = vmatmul.mubr.f32.gmra.mrb[0].mxu0 %v827
    %v1220 = vpop.f32.mrb[0].mxu0
    %v1221 = vadd.f32 0.0, %v1220
    %v1222 = vpop.f32.mrb[0].mxu0
    %1223 = vmatprep.mubr.f32.mxu0 0.0
    %1224 = vmatmul.mubr.f32.gmra.mrb[0].mxu0 %v830
    %v1225 = vpop.f32.mrb[0].mxu0
    %v1226 = vadd.f32 0.0, %v1225
    %v1227 = vpop.f32.mrb[0].mxu0
    %1228 = vmatprep.mubr.f32.mxu0 0.0
    %1229 = vmatmul.mubr.f32.gmra.mrb[0].mxu0 %v833
    %v1230 = vpop.f32.mrb[0].mxu0
    %v1231 = vadd.f32 0.0, %v1230
    %v1232 = vpop.f32.mrb[0].mxu0
    %1233 = vmatprep.mubr.f32.mxu0 0.0
    %1234 = vmatmul.mubr.f32.gmra.mrb[0].mxu0 %v836
    %v1235 = vpop.f32.mrb[0].mxu0
    %v1236 = vadd.f32 0.0, %v1235
    %v1237 = vpop.f32.mrb[0].mxu0
    %1238 = vmatprep.mubr.f32.mxu0 0.0
    %1239 = vmatmul.mubr.f32.gmra.mrb[0].mxu0 %v839
    %v1240 = vpop.f32.mrb[0].mxu0
    %v1241 = vadd.f32 0.0, %v1240
    %v1242 = vpop.f32.mrb[0].mxu0
    %1243 = vmatprep.mubr.f32.mxu0 0.0
    %1244 = vmatmul.mubr.f32.gmra.mrb[0].mxu0 %v842
    %v1245 = vpop.f32.mrb[0].mxu0
    %v1246 = vadd.f32 0.0, %v1245
    %v1247 = vpop.f32.mrb[0].mxu0
    %1248 = vmatprep.mubr.f32.mxu0 0.0
    %1249 = vmatmul.mubr.f32.gmra.mrb[0].mxu0 %v845
    %v1250 = vpop.f32.mrb[0].mxu0
    %v1251 = vadd.f32 0.0, %v1250
    %v1252 = vpop.f32.mrb[0].mxu0
    %1253 = vdwg.mxu0
    %1254 = vrot.lane.b32.xlu0 %v952, 64
    %v1255 = vpop.permute.xlu0 %1254
    %1256 = vrot.lane.b32.xlu0 %v953, 64
    %v1257 = vpop.permute.xlu0 %1256
    %1258 = vrot.lane.b32.xlu0 %v954, 64
    %v1259 = vpop.permute.xlu0 %1258
    %1260 = vrot.lane.b32.xlu0 %v955, 64
    %v1261 = vpop.permute.xlu0 %1260
    %1262 = vrot.lane.b32.xlu0 %v956, 64
    %v1263 = vpop.permute.xlu0 %1262
    %1264 = vrot.lane.b32.xlu0 %v957, 64
    %v1265 = vpop.permute.xlu0 %1264
    %1266 = vrot.lane.b32.xlu0 %v958, 64
    %v1267 = vpop.permute.xlu0 %1266
    %1268 = vrot.lane.b32.xlu0 %v959, 64
    %v1269 = vpop.permute.xlu0 %1268
    %v1278 = vmul.f32 %v1216, %v1255
    %v1279 = vmul.f32 %v1221, %v1257
    %v1280 = vmul.f32 %v1226, %v1259
    %v1281 = vmul.f32 %v1231, %v1261
    %v1282 = vmul.f32 %v1236, %v1263
    %v1283 = vmul.f32 %v1241, %v1265
    %v1284 = vmul.f32 %v1246, %v1267
    %v1285 = vmul.f32 %v1251, %v1269
    %1286 = vrot.lane.b32.xlu0 %v952, 32
    %v1287 = vpop.permute.xlu0 %1286
    %1288 = vrot.lane.b32.xlu0 %v953, 32
    %v1289 = vpop.permute.xlu0 %1288
    %1290 = vrot.lane.b32.xlu0 %v954, 32
    %v1291 = vpop.permute.xlu0 %1290
    %1292 = vrot.lane.b32.xlu0 %v955, 32
    %v1293 = vpop.permute.xlu0 %1292
    %1294 = vrot.lane.b32.xlu0 %v956, 32
    %v1295 = vpop.permute.xlu0 %1294
    %1296 = vrot.lane.b32.xlu0 %v957, 32
    %v1297 = vpop.permute.xlu0 %1296
    %1298 = vrot.lane.b32.xlu0 %v958, 32
    %v1299 = vpop.permute.xlu0 %1298
    %1300 = vrot.lane.b32.xlu0 %v959, 32
    %v1301 = vpop.permute.xlu0 %1300
    %v1310 = vadd.f32 %v1278, %v1287
    %v1311 = vadd.f32 %v1279, %v1289
    %v1312 = vadd.f32 %v1280, %v1291
    %v1313 = vadd.f32 %v1281, %v1293
    %v1314 = vadd.f32 %v1282, %v1295
    %v1315 = vadd.f32 %v1283, %v1297
    %v1316 = vadd.f32 %v1284, %v1299
    %v1317 = vadd.f32 %v1285, %v1301
    %v1318 = vmax.f32 %v1310, 0.0
    %v1319 = vmax.f32 %v1311, 0.0
    %v1320 = vmax.f32 %v1312, 0.0
    %v1321 = vmax.f32 %v1313, 0.0
    %v1322 = vmax.f32 %v1314, 0.0
    %v1323 = vmax.f32 %v1315, 0.0
    %v1324 = vmax.f32 %v1316, 0.0
    %v1325 = vmax.f32 %v1317, 0.0
    %v1326 = vld [vmem:[#allocation7 + $0x58] sm:$0xff]
    %v1327 = vld [vmem:[#allocation7 + $0x60] sm:$0xff]
    %v1328 = vld [vmem:[#allocation7 + $0x68] sm:$0xff]
    %v1329 = vld [vmem:[#allocation7 + $0x70] sm:$0xff]
    %v1330 = vld [vmem:[#allocation7 + $0x15] sm:$0x1]
    %v1331 = vlaneseq
    %v1332 = vshrl.u32 %v1331, 7
    %v1333 = vsub.s32 0, %v1332
    %v1334 = vrot.slane %v1330, %v1333
    %v1336 = vsel %vm692, %v1318, 0
    %v1339 = vsel %vm692, %v1319, 0
    %v1342 = vsel %vm692, %v1320, 0
    %v1345 = vsel %vm692, %v1321, 0
    %v1348 = vsel %vm692, %v1322, 0
    %v1351 = vsel %vm692, %v1323, 0
    %v1354 = vsel %vm692, %v1324, 0
    %v1357 = vsel %vm692, %v1325, 0
    %1359 = vmatprep.subr.mxu0 0.0
    %1360 = vmatpush1.msra.mxu0 %v1326
    %1361 = vmatprep.subr.mxu0 0.0
    %1362 = vmatpush1.msra.mxu0 %v1327
    %1363 = vmatprep.subr.mxu0 0.0
    %1364 = vmatpush1.msra.mxu0 %v1328
    %1365 = vmatprep.subr.mxu0 0.0
    %1366 = vmatpush1.msra.mxu0 %v1329
    %1367 = vmatprep.subr.mxu0 0.0
    %1368 = vmatpush1.msra.mxu0 0.0
    %1369 = vmatprep.subr.mxu0 0.0
    %1370 = vmatpush1.msra.mxu0 0.0
    %1371 = vmatprep.subr.mxu0 0.0
    %1372 = vmatpush1.msra.mxu0 0.0
    %1373 = vmatprep.subr.mxu0 0.0
    %1374 = vmatpush1.msra.mxu0 0.0
    %1375 = vmatprep.subr.mxu0 0.0
    %1376 = vmatpush1.msra.mxu0 0.0
    %1377 = vmatprep.subr.mxu0 0.0
    %1378 = vmatpush1.msra.mxu0 0.0
    %1379 = vmatprep.subr.mxu0 0.0
    %1380 = vmatpush1.msra.mxu0 0.0
    %1381 = vmatprep.subr.mxu0 0.0
    %1382 = vmatpush1.msra.mxu0 0.0
    %1383 = vmatprep.subr.mxu0 0.0
    %1384 = vmatpush1.msra.mxu0 0.0
    %1385 = vmatprep.subr.mxu0 0.0
    %1386 = vmatpush1.msra.mxu0 0.0
    %1387 = vmatprep.subr.mxu0 0.0
    %1388 = vmatpush1.msra.mxu0 0.0
    %1389 = vmatprep.subr.mxu0 0.0
    %1390 = vmatpush1.msra.mxu0 0.0
    %1391 = vmatprep.subr.mxu0 0.0
    %1392 = vmatpush1.msra.mxu0 0.0
    %1393 = vmatprep.subr.mxu0 0.0
    %1394 = vmatpush1.msra.mxu0 0.0
    %1395 = vmatprep.subr.mxu0 0.0
    %1396 = vmatpush1.msra.mxu0 0.0
    %1397 = vmatprep.subr.mxu0 0.0
    %1398 = vmatpush1.msra.mxu0 0.0
    %1399 = vmatprep.subr.mxu0 0.0
    %1400 = vmatpush1.msra.mxu0 0.0
    %1401 = vmatprep.subr.mxu0 0.0
    %1402 = vmatpush1.msra.mxu0 0.0
    %1403 = vmatprep.subr.mxu0 0.0
    %1404 = vmatpush1.msra.mxu0 0.0
    %1405 = vmatprep.subr.mxu0 0.0
    %1406 = vmatpush1.msra.mxu0 0.0
    %1407 = vmatprep.subr.mxu0 0.0
    %1408 = vmatpush1.msra.mxu0 0.0
    %1409 = vmatprep.subr.mxu0 0.0
    %1410 = vmatpush1.msra.mxu0 0.0
    %1411 = vmatprep.subr.mxu0 0.0
    %1412 = vmatpush1.msra.mxu0 0.0
    %1413 = vmatprep.subr.mxu0 0.0
    %1414 = vmatpush1.msra.mxu0 0.0
    %1415 = vmatprep.subr.mxu0 0.0
    %1416 = vmatpush1.msra.mxu0 0.0
    %1417 = vmatprep.subr.mxu0 0.0
    %1418 = vmatpush1.msra.mxu0 0.0
    %1419 = vmatprep.subr.mxu0 0.0
    %1420 = vmatpush1.msra.mxu0 0.0
    %1421 = vmatprep.subr.mxu0 0.0
    %1422 = vmatpush1.msra.mxu0 0.0
    %1423 = vmatprep.mubr.f32.mxu0 0.0
    %1424 = vmatmul.mubr.f32.gmra.mrb[0].mxu0 %v1336
    %v1425 = vpop.f32.mrb[0].mxu0
    %v1426 = vadd.f32 %v1334, %v1425
    %v1427 = vpop.f32.mrb[0].mxu0
    %1428 = vmatprep.mubr.f32.mxu0 0.0
    %1429 = vmatmul.mubr.f32.gmra.mrb[0].mxu0 %v1339
    %v1430 = vpop.f32.mrb[0].mxu0
    %v1431 = vadd.f32 %v1334, %v1430
    %v1432 = vpop.f32.mrb[0].mxu0
    %1433 = vmatprep.mubr.f32.mxu0 0.0
    %1434 = vmatmul.mubr.f32.gmra.mrb[0].mxu0 %v1342
    %v1435 = vpop.f32.mrb[0].mxu0
    %v1436 = vadd.f32 %v1334, %v1435
    %v1437 = vpop.f32.mrb[0].mxu0
    %1438 = vmatprep.mubr.f32.mxu0 0.0
    %1439 = vmatmul.mubr.f32.gmra.mrb[0].mxu0 %v1345
    %v1440 = vpop.f32.mrb[0].mxu0
    %v1441 = vadd.f32 %v1334, %v1440
    %v1442 = vpop.f32.mrb[0].mxu0
    %1443 = vmatprep.mubr.f32.mxu0 0.0
    %1444 = vmatmul.mubr.f32.gmra.mrb[0].mxu0 %v1348
    %v1445 = vpop.f32.mrb[0].mxu0
    %v1446 = vadd.f32 %v1334, %v1445
    %v1447 = vpop.f32.mrb[0].mxu0
    %1448 = vmatprep.mubr.f32.mxu0 0.0
    %1449 = vmatmul.mubr.f32.gmra.mrb[0].mxu0 %v1351
    %v1450 = vpop.f32.mrb[0].mxu0
    %v1451 = vadd.f32 %v1334, %v1450
    %v1452 = vpop.f32.mrb[0].mxu0
    %1453 = vmatprep.mubr.f32.mxu0 0.0
    %1454 = vmatmul.mubr.f32.gmra.mrb[0].mxu0 %v1354
    %v1455 = vpop.f32.mrb[0].mxu0
    %v1456 = vadd.f32 %v1334, %v1455
    %v1457 = vpop.f32.mrb[0].mxu0
    %1458 = vmatprep.mubr.f32.mxu0 0.0
    %1459 = vmatmul.mubr.f32.gmra.mrb[0].mxu0 %v1357
    %v1460 = vpop.f32.mrb[0].mxu0
    %v1461 = vadd.f32 %v1334, %v1460
    %v1462 = vpop.f32.mrb[0].mxu0
    %1463 = vdwg.mxu0
    %1464 = vst [vmem:[#allocation8] sm:$0xff] %v1426
    %1465 = vst [vmem:[#allocation8 + $0x8] sm:$0xff] %v1431
    %1466 = vst [vmem:[#allocation8 + $0x10] sm:$0xff] %v1436
    %1467 = vst [vmem:[#allocation8 + $0x18] sm:$0xff] %v1441
    %1468 = vst [vmem:[#allocation8 + $0x20] sm:$0xff] %v1446
    %1469 = vst [vmem:[#allocation8 + $0x28] sm:$0xff] %v1451
    %1470 = vst [vmem:[#allocation8 + $0x30] sm:$0xff] %v1456
    %1471 = vst [vmem:[#allocation8 + $0x38] sm:$0xff] %v1461
    // Predicated region
    $region26: #{tpu_custom_call.1} parent=1 // pred_check
      _
    $region27: #{tpu_custom_call.1} parent=1 // pred_check_branch
      %1473 = sbr.rel (0) target = $region29
    $region28: #{tpu_custom_call.1} parent=1 // pred_region
      %s1475 = ssub.s32 1024, 1024
      %1476 = vsyncadd [#allocation4], %s1475
      %s1477 = sshll.u32 [#allocation8], 4
      %s1478 = int_to_ptr.vmem [resolvable:$true] %s1477
      %1483 = dma.vmem_to_hbm [thread:$0]  %s1478, 1024, %s3, [#allocation4], 128, 128, 8
    $region29: #{tpu_custom_call.1} parent=1 // pred_fallthru
      _
    // Predicated region
    $region30: #{tpu_custom_call.1} parent=1 // pred_check
      _
    $region31: #{tpu_custom_call.1} parent=1 // pred_check_branch
      %1485 = sbr.rel (0) target = $region33
    $region32: #{tpu_custom_call.1} parent=1 // pred_region
      %1486 = dma.done [#allocation4], 1024
    $region33: #{tpu_custom_call.1} parent=1 // pred_fallthru
      _
    %1487 = vsyncpa [#allocation3], 1
    %1488 = vsyncpa [#allocation6], 1
    %1489 = vsyncpa [#allocation4], 1

</llo_original>
